<compile_context>
chip_gen: v7x
topology: tpu7x:2x2x1
jax: 0.10.0
libtpu: 0.0.40
codegen_flags: <defaults>
</compile_context>

<pallas_src>
import jax
import jax.numpy as jnp
from jax.experimental import pallas as pl
from jax.experimental.pallas import tpu as pltpu


def se_attention_kernel(x_ref, w1t_ref, w2t_ref, o_ref):
    # x_ref  : (Bt, C, L)   slab of batch elements
    # w1t_ref: (C, H)       fc1 weight, pre-transposed (H = C // reduction)
    # w2t_ref: (H, C)       fc2 weight, pre-transposed
    # o_ref  : (Bt, C, L)
    x = x_ref[...]                                               # (Bt, C, L)
    l = x.shape[-1]

    # Squeeze: global average pool over the length axis (f32 accumulation).
    means = jnp.sum(x.astype(jnp.float32), axis=-1) * (1.0 / l)  # (Bt, C)

    # Excite: Linear -> ReLU -> Linear -> Sigmoid, batched across Bt rows.
    hidden = jnp.dot(means, w1t_ref[...],
                     preferred_element_type=jnp.float32)         # (Bt, H)
    hidden = jnp.maximum(hidden, 0.0)
    gate = jnp.dot(hidden, w2t_ref[...],
                   preferred_element_type=jnp.float32)           # (Bt, C)
    gate = jax.nn.sigmoid(gate)                                  # EUP slot

    # Scale: broadcast per-(batch, channel) gate over the length axis.
    gate = gate.astype(x.dtype)
    o_ref[...] = (x * gate[:, :, None]).astype(o_ref.dtype)


def _choose_block_b(b, c, l, itemsize, vmem_budget_bytes):
    """Largest divisor of b whose double-buffered in+out slabs fit the VMEM
    budget, capped so the grid keeps >= 4 steps (2 per TensorCore on v7x)
    when b allows it, and >= 2 steps when b >= 2."""
    per_elem = 4 * c * l * itemsize          # 2 buffers * (in + out) per batch elem
    max_bt = max(1, vmem_budget_bytes // per_elem)
    if b >= 4:
        max_bt = min(max_bt, b // 4)         # >= 4 grid steps: overlap per core
    elif b >= 2:
        max_bt = min(max_bt, b // 2)         # at least one step per core
    max_bt = max(1, max_bt)
    bt = 1
    for d in range(1, b + 1):
        if b % d == 0 and d <= max_bt:
            bt = d
    return bt


def se_attention(x, w1, w2):
    """x: (B, C, L); w1: (C//r, C); w2: (C, C//r)  (PyTorch Linear layouts)."""
    b, c, l = x.shape
    h = w1.shape[0]
    assert w1.shape == (h, c) and w2.shape == (c, h)

    # Trace-time weight transposes (layout plumbing, free in the hot loop).
    w1t = jnp.transpose(w1)                  # (C, H)
    w2t = jnp.transpose(w2)                  # (H, C)

    itemsize = x.dtype.itemsize
    # Conservative slab budget so the same tiling double-buffers cleanly on
    # v7x (64 MiB physical VMEM) as well as v5e/v6e (128 MiB).
    vmem_budget = 24 * 1024 * 1024
    bt = _choose_block_b(b, c, l, itemsize, vmem_budget)
    grid = (b // bt,)
    # TODO(synk): if a single (1, C, L) slab ever exceeds VMEM, switch to a
    # two-pass (reduce-then-scale) variant tiled over L; not needed here.

    # Explicit VMEM limit: double-buffered x/out blocks + weights + headroom,
    # clamped to v7x's 64 MiB physical VMEM.
    block_bytes = bt * c * l * itemsize
    weight_bytes = 2 * c * h * w1.dtype.itemsize
    vmem_limit = min(64 * 1024 * 1024,
                     4 * block_bytes + 2 * weight_bytes + (8 * 1024 * 1024))

    flops = 2 * b * c * l + 4 * b * c * h        # mean + scale + two matmuls
    cost = pl.CostEstimate(
        flops=flops,
        transcendentals=b * c,                   # sigmoid
        bytes_accessed=2 * b * c * l * itemsize + weight_bytes,
    )

    return pl.pallas_call(
        se_attention_kernel,
        out_shape=jax.ShapeDtypeStruct((b, c, l), x.dtype),
        grid_spec=pltpu.PrefetchScalarGridSpec(
            num_scalar_prefetch=0,
            grid=grid,
            in_specs=[
                pl.BlockSpec((bt, c, l), lambda i: (i, 0, 0)),
                pl.BlockSpec((c, h), lambda i: (0, 0)),   # resident across steps
                pl.BlockSpec((h, c), lambda i: (0, 0)),   # resident across steps
            ],
            out_specs=pl.BlockSpec((bt, c, l), lambda i: (i, 0, 0)),
        ),
        compiler_params=pltpu.CompilerParams(
            dimension_semantics=("parallel",),
            vmem_limit_bytes=int(vmem_limit),
        ),
        cost_estimate=cost,
    )(x, w1t, w2t)


def se_attention_ref(x, w1, w2):
    """Pure-JAX reference matching the PyTorch module semantics."""
    y = jnp.mean(x, axis=-1)                                # (B, C)
    y = jnp.maximum(y @ w1.T, 0.0)                          # (B, H)
    y = jax.nn.sigmoid(y @ w2.T)                            # (B, C)
    return x * y[:, :, None]


if __name__ == "__main__":
    # Small, TPU-friendly shapes consistent with the module:
    # C divisible by reduction, L a multiple of 128, B with divisors so the
    # kernel can block several batch elements per step while keeping >=4 steps.
    B, C, L = 8, 256, 512
    reduction = 8
    H = C // reduction

    key = jax.random.PRNGKey(0)
    kx, k1, k2 = jax.random.split(key, 3)

    x = jax.random.normal(kx, (B, C, L), dtype=jnp.float32)
    # Deterministic Linear weights (init.normal_(std=0.001) style, no bias).
    w1 = 0.001 * jax.random.normal(k1, (H, C), dtype=jnp.float32)
    w2 = 0.001 * jax.random.normal(k2, (C, H), dtype=jnp.float32)

    out = jax.block_until_ready(se_attention(x, w1, w2))

    ref = se_attention_ref(x, w1, w2)
    assert out.shape == (B, C, L)
    assert jnp.allclose(out, ref, atol=1e-5, rtol=1e-5)

    print("KERNEL_OK")
</pallas_src>

<mosaic_0001>
module attributes {stable_mosaic.version = 11 : i64} {
  func.func @se_attention_kernel(%arg0: i32, %arg1: memref<2x256x512xf32, #tpu.memory_space<vmem>>, %arg2: memref<256x32xf32, #tpu.memory_space<vmem>>, %arg3: memref<32x256xf32, #tpu.memory_space<vmem>>, %arg4: memref<2x256x512xf32, #tpu.memory_space<vmem>>) attributes {dimension_semantics = [#tpu.dimension_semantics<parallel>], iteration_bounds = array<i64: 4>, scalar_prefetch = 0 : i64, scratch_operands = 0 : i64, tpu.core_type = #tpu.core_type<tc>, window_params = [{transform_indices = @transform_0, window_bounds = array<i64: 2, 256, 512>}, {pipeline_mode = #tpu.pipeline_mode<synchronous>, transform_indices = @transform_1, window_bounds = array<i64: 256, 32>}, {pipeline_mode = #tpu.pipeline_mode<synchronous>, transform_indices = @transform_2, window_bounds = array<i64: 32, 256>}, {transform_indices = @transform_3, window_bounds = array<i64: 2, 256, 512>}]} {
    %c0 = arith.constant 0 : index
    %c0_0 = arith.constant 0 : index
    %c0_1 = arith.constant 0 : index
    %0 = vector.load %arg1[%c0, %c0_0, %c0_1] : memref<2x256x512xf32, #tpu.memory_space<vmem>>, vector<2x256x512xf32>
    %cst = arith.constant dense<0.000000e+00> : vector<2x256xf32>
    %1 = vector.multi_reduction <add>, %0, %cst [2] : vector<2x256x512xf32> to vector<2x256xf32>
    %cst_2 = arith.constant 0.001953125 : f32
    %2 = vector.broadcast %cst_2 : f32 to vector<2x256xf32>
    %3 = arith.mulf %1, %2 : vector<2x256xf32>
    %c0_3 = arith.constant 0 : index
    %c0_4 = arith.constant 0 : index
    %4 = vector.load %arg2[%c0_3, %c0_4] : memref<256x32xf32, #tpu.memory_space<vmem>>, vector<256x32xf32>
    %cst_5 = arith.constant dense<0.000000e+00> : vector<2x32xf32>
    %5 = tpu.matmul %3, %4, %cst_5 {dimension_numbers = #tpu.dot_dimension_numbers<[1], [0], [0], [1], [0, 0, 1, 1], [], []>} : vector<2x256xf32>, vector<256x32xf32>, vector<2x32xf32> -> vector<2x32xf32>
    %cst_6 = arith.constant 0.000000e+00 : f32
    %6 = vector.broadcast %cst_6 : f32 to vector<2x32xf32>
    %7 = arith.maximumf %5, %6 : vector<2x32xf32>
    %c0_7 = arith.constant 0 : index
    %c0_8 = arith.constant 0 : index
    %8 = vector.load %arg3[%c0_7, %c0_8] : memref<32x256xf32, #tpu.memory_space<vmem>>, vector<32x256xf32>
    %cst_9 = arith.constant dense<0.000000e+00> : vector<2x256xf32>
    %9 = tpu.matmul %7, %8, %cst_9 {dimension_numbers = #tpu.dot_dimension_numbers<[1], [0], [0], [1], [0, 0, 1, 1], [], []>} : vector<2x32xf32>, vector<32x256xf32>, vector<2x256xf32> -> vector<2x256xf32>
    %10 = arith.negf %9 : vector<2x256xf32>
    %11 = math.exp %10 : vector<2x256xf32>
    %cst_10 = arith.constant 1.000000e+00 : f32
    %12 = vector.broadcast %cst_10 : f32 to vector<2x256xf32>
    %13 = arith.addf %12, %11 : vector<2x256xf32>
    %14 = arith.divf %12, %13 : vector<2x256xf32>
    %15 = vector.shape_cast %14 : vector<2x256xf32> to vector<2x256x1xf32>
    %16 = vector.broadcast %15 : vector<2x256x1xf32> to vector<2x256x512xf32>
    %17 = arith.mulf %0, %16 : vector<2x256x512xf32>
    %c0_11 = arith.constant 0 : index
    %c0_12 = arith.constant 0 : index
    %c0_13 = arith.constant 0 : index
    %18 = vector.load %arg4[%c0_11, %c0_12, %c0_13] : memref<2x256x512xf32, #tpu.memory_space<vmem>>, vector<2x256x512xf32>
    tpu.vector_store %arg4[%c0_11, %c0_12, %c0_13], %17 {strides = array<i32>} : memref<2x256x512xf32, #tpu.memory_space<vmem>>, vector<2x256x512xf32>,
    return
  }
  func.func @transform_0(%arg0: i32) -> (i32, i32, i32) {
    %c0_i32 = arith.constant 0 : i32
    %c0_i32_0 = arith.constant 0 : i32
    %c0_i32_1 = arith.constant 0 : i32
    return %arg0, %c0_i32, %c0_i32_0 : i32, i32, i32
  }
  func.func @transform_1(%arg0: i32) -> (i32, i32) {
    %c0_i32 = arith.constant 0 : i32
    %c0_i32_0 = arith.constant 0 : i32
    %c0_i32_1 = arith.constant 0 : i32
    return %c0_i32, %c0_i32_0 : i32, i32
  }
  func.func @transform_2(%arg0: i32) -> (i32, i32) {
    %c0_i32 = arith.constant 0 : i32
    %c0_i32_0 = arith.constant 0 : i32
    %c0_i32_1 = arith.constant 0 : i32
    return %c0_i32, %c0_i32_0 : i32, i32
  }
  func.func @transform_3(%arg0: i32) -> (i32, i32, i32) {
    %c0_i32 = arith.constant 0 : i32
    %c0_i32_0 = arith.constant 0 : i32
    %c0_i32_1 = arith.constant 0 : i32
    return %arg0, %c0_i32, %c0_i32_0 : i32, i32, i32
  }
}

</mosaic_0001>

<llo_original>
// kernel: tpu_custom_call.1
$region0: #{tpu_custom_call.1}
  #allocation0 [shape = 'u32[]', space=smem, size = 0x4, offset = 0x4, fixed_abs, tag = 'smem constant byte address 0x4 - core index']
  #allocation1 [shape = 'u32[144,128]{1,0:T(1,128)}', space=vmem, size = 0x12000, scoped, tag = 'internal scratch']
  %s0 = inlined_call_operand.hbm [shape: f32[8,256,512], index: 0, kind: input, shape index: {}]
  %s1 = inlined_call_operand.vmem [shape: f32[256,32], index: 1, kind: input, shape index: {}]
  %s2 = inlined_call_operand.hbm [shape: f32[32,256], index: 2, kind: input, shape index: {}]
  %s3 = inlined_call_operand.hbm [shape: f32[8,256,512], index: 3, kind: output, shape index: {}]
  %s4 = sld [smem:[#allocation0]]
  $region53: #{tpu_custom_call.1} parent=0
    _
  %s6 = ssub.s32 1, %s4
  %s7 = scalar_select 0, %s6, %s4
  $region1: #{tpu_custom_call.1} parent=0
    #allocation2 [shape = 'u8[2097152]{0}', space=vmem, size = 0x200000, scoped, tag = 'input window, operand 0']
    #allocation3 [shape = 's32[2]{0}', space=sflag, size = 0x8, scoped, tag = 'scoped memory for tpu_custom_call.1']
    #allocation4 [shape = 's32[2]{0}', space=sflag, size = 0x8, scoped, tag = 'scoped memory for tpu_custom_call.1']
    #allocation5 [shape = 'u8[32768]{0}', space=vmem, size = 0x8000, scoped, tag = 'input window, operand 2, single buffered']
    #allocation6 [shape = 's32[1]{0}', space=sflag, size = 0x4, scoped, tag = 'scoped memory for tpu_custom_call.1']
    #allocation7 [shape = 'u8[2097152]{0}', space=vmem, size = 0x200000, scoped, tag = 'output window, operand 0']
    %8 = vsyncpa [#allocation3], 0
    %s9 = scalar_lea.sflag [#allocation3], 1
    %10 = vsyncpa %s9, 0
    %11 = vsyncpa [#allocation6], 0
    %12 = vsyncpa [#allocation4], 0
    %s13 = scalar_lea.sflag [#allocation4], 1
    %14 = vsyncpa %s13, 0
    loop: start=0, step=1, limit=6
    $region2: #{tpu_custom_call.1} parent=1 // loop_pre_header
      _
    $region3: #{tpu_custom_call.1} parent=1 // loop_header
      %s16 = sphi 0, %s20
      %p17 = scmp.ge.s32.totalorder %s16, 6
      %s26 = sphi 0, %s28
      %s29 = sphi 0, %s26
      %s30 = sphi 0, %s29
      %s46 = sphi 0, %s30
      %s50 = sphi 0, %s50
      %s52 = sphi 0, %s50
      %s53 = sphi 0, %s52
      %s67 = sphi 0, %s53
      %s71 = sphi 0, %s71
      %s73 = sphi 0, %s71
      %s74 = sphi 0, %s73
      %s88 = sphi 0, %s74
      %s94 = sphi 0, %s96
      %s97 = sphi 0, %s94
      %s98 = sphi 0, %s97
      %s114 = sphi 0, %s98
    $region4: #{tpu_custom_call.1} parent=1 // loop_header_branch
      %19 = sbr.rel (%p17) target = $region8
    $region5: #{tpu_custom_call.1} parent=1 // loop_body
      %s21 = ssub.s32 %s16, 1
      %s22 = ssub.s32 %s16, 2
      %s23 = sadd.s32 %s16, 1
      %s24 = ssub.s32 %s16, %s23
      %p25 = scmp.eq.s32.totalorder %s24, 0
      %s27 = sadd.s32 %s26, 1
      %s28 = scalar_select %p25, %s26, %s27
      %p31 = pneg %p25
      %p32 = scmp.eq.s32.totalorder %s16, 3
      %p33 = por %p31, %p32
      %p34 = scmp.ne.s32.totalorder %s26, %s29
      %p35 = scmp.eq.s32.totalorder %s16, 0
      %p36 = por %p34, %p35
      %p37 = scmp.ne.s32.totalorder %s26, %s29
      %p38 = scmp.eq.s32.totalorder %s21, 3
      %p39 = por %p37, %p38
      %p40 = scmp.ne.s32.totalorder %s29, %s30
      %p41 = scmp.eq.s32.totalorder %s21, 0
      %p42 = por %p40, %p41
      %p43 = scmp.ne.s32.totalorder %s29, %s30
      %p44 = scmp.eq.s32.totalorder %s22, 3
      %p45 = por %p43, %p44
      %p47 = scmp.ne.s32.totalorder %s30, %s46
      %p48 = scmp.eq.s32.totalorder %s22, 0
      %p49 = por %p47, %p48
      %s51 = sadd.s32 %s50, 1
      %p54 = scmp.eq.s32.totalorder %s16, 3
      %p55 = scmp.ne.s32.totalorder %s50, %s52
      %p56 = scmp.eq.s32.totalorder %s16, 0
      %p57 = por %p55, %p56
      %p58 = scmp.ne.s32.totalorder %s50, %s52
      %p59 = scmp.eq.s32.totalorder %s21, 3
      %p60 = por %p58, %p59
      %p61 = scmp.ne.s32.totalorder %s52, %s53
      %p62 = scmp.eq.s32.totalorder %s21, 0
      %p63 = por %p61, %p62
      %p64 = scmp.ne.s32.totalorder %s52, %s53
      %p65 = scmp.eq.s32.totalorder %s22, 3
      %p66 = por %p64, %p65
      %p68 = scmp.ne.s32.totalorder %s53, %s67
      %p69 = scmp.eq.s32.totalorder %s22, 0
      %p70 = por %p68, %p69
      %s72 = sadd.s32 %s71, 1
      %p75 = scmp.eq.s32.totalorder %s16, 3
      %p76 = scmp.ne.s32.totalorder %s71, %s73
      %p77 = scmp.eq.s32.totalorder %s16, 0
      %p78 = por %p76, %p77
      %p79 = scmp.ne.s32.totalorder %s71, %s73
      %p80 = scmp.eq.s32.totalorder %s21, 3
      %p81 = por %p79, %p80
      %p82 = scmp.ne.s32.totalorder %s73, %s74
      %p83 = scmp.eq.s32.totalorder %s21, 0
      %p84 = por %p82, %p83
      %p85 = scmp.ne.s32.totalorder %s73, %s74
      %p86 = scmp.eq.s32.totalorder %s22, 3
      %p87 = por %p85, %p86
      %p89 = scmp.ne.s32.totalorder %s74, %s88
      %p90 = scmp.eq.s32.totalorder %s22, 0
      %p91 = por %p89, %p90
      %s92 = ssub.s32 %s16, %s23
      %p93 = scmp.eq.s32.totalorder %s92, 0
      %s95 = sadd.s32 %s94, 1
      %s96 = scalar_select %p93, %s94, %s95
      %p99 = pneg %p93
      %p100 = scmp.eq.s32.totalorder %s16, 3
      %p101 = por %p99, %p100
      %p102 = scmp.ne.s32.totalorder %s94, %s97
      %p103 = scmp.eq.s32.totalorder %s16, 0
      %p104 = por %p102, %p103
      %p105 = scmp.ne.s32.totalorder %s94, %s97
      %p106 = scmp.eq.s32.totalorder %s21, 3
      %p107 = por %p105, %p106
      %p108 = scmp.ne.s32.totalorder %s97, %s98
      %p109 = scmp.eq.s32.totalorder %s21, 0
      %p110 = por %p108, %p109
      %p111 = scmp.ne.s32.totalorder %s97, %s98
      %p112 = scmp.eq.s32.totalorder %s22, 3
      %p113 = por %p111, %p112
      %p115 = scmp.ne.s32.totalorder %s98, %s114
      %p116 = scmp.eq.s32.totalorder %s22, 0
      %p117 = por %p115, %p116
      %p118 = scmp.le.s32.totalorder 1, %s16
      %p119 = scmp.lt.s32.totalorder %s16, 5
      %p120 = pnand %p118, %p119
      %p121 = pneg %p120
      // Predicated region
      $region9: #{tpu_custom_call.1} parent=5 // pred_check
        _
      $region10: #{tpu_custom_call.1} parent=5 // pred_check_branch
        %123 = sbr.rel (%p120) target = $region12
      $region11: #{tpu_custom_call.1} parent=5 // pred_region
        %s124 = ssub.s32 %s16, 1
        // Predicated region
        $region13: #{tpu_custom_call.1} parent=11 // pred_check
          %p125 = pneg %p63
        $region14: #{tpu_custom_call.1} parent=11 // pred_check_branch
          %127 = sbr.rel (%p125) target = $region16
        $region15: #{tpu_custom_call.1} parent=11 // pred_region
          _
        $region16: #{tpu_custom_call.1} parent=11 // pred_fallthru
          _
        // Predicated region
        $region17: #{tpu_custom_call.1} parent=11 // pred_check
          %p128 = pneg %p84
        $region18: #{tpu_custom_call.1} parent=11 // pred_check_branch
          %130 = sbr.rel (%p128) target = $region20
        $region19: #{tpu_custom_call.1} parent=11 // pred_region
          %s132 = ssub.s32 1024, 1024
          %133 = vsyncadd [#allocation6], %s132
          %s134 = sshll.u32 [#allocation5], 4
          %s135 = int_to_ptr.vmem [resolvable:$true] %s134
          %140 = dma.hbm_to_vmem [thread:$0]  %s2, 1024, %s135, [#allocation6], 256, 256, 16
        $region20: #{tpu_custom_call.1} parent=11 // pred_fallthru
          _
      $region12: #{tpu_custom_call.1} parent=5 // pred_fallthru
        _
      %p141 = scmp.lt.s32.totalorder %s16, 4
      // Predicated region
      $region21: #{tpu_custom_call.1} parent=5 // pred_check
        %p142 = pneg %p141
      $region22: #{tpu_custom_call.1} parent=5 // pred_check_branch
        %144 = sbr.rel (%p142) target = $region24
      $region23: #{tpu_custom_call.1} parent=5 // pred_region
        // Predicated region
        $region25: #{tpu_custom_call.1} parent=23 // pred_check
          %p145 = pneg %p36
        $region26: #{tpu_custom_call.1} parent=23 // pred_check_branch
          %147 = sbr.rel (%p145) target = $region28
        $region27: #{tpu_custom_call.1} parent=23 // pred_region
          %s148 = sand.u32 %s26, 1
          %s149 = scalar_lea.sflag [#allocation3], %s148
          %s150 = sand.u32 %s26, 1
          %s151 = smul.addr %s150, 2048
          %s152 = scalar_lea.vmem [#allocation2], %s151
          %s153 = smul.u32 2, %s16
          %s155 = ssub.s32 32768, 32768
          %156 = vsyncadd %s149, %s155
          %s157 = smul.addr %s153, 128
          %s158 = smul.addr %s157, 128
          %s159 = scalar_lea.hbm %s0, %s158
          %s160 = sshll.u32 %s152, 4
          %s161 = int_to_ptr.vmem [resolvable:$true] %s160
          %166 = dma.hbm_to_vmem [thread:$0]  %s159, 32768, %s161, %s149, 512, 512, 32
        $region28: #{tpu_custom_call.1} parent=23 // pred_fallthru
          _
      $region24: #{tpu_custom_call.1} parent=5 // pred_fallthru
        _
      %p167 = scmp.le.s32.totalorder 1, %s16
      %p168 = scmp.lt.s32.totalorder %s16, 5
      %p169 = pnand %p167, %p168
      %p170 = pneg %p169
      // Predicated region
      $region29: #{tpu_custom_call.1} parent=5 // pred_check
        _
      $region30: #{tpu_custom_call.1} parent=5 // pred_check_branch
        %172 = sbr.rel (%p169) target = $region32
      $region31: #{tpu_custom_call.1} parent=5 // pred_region
        %s173 = ssub.s32 %s16, 1
        %s174 = sand.u32 %s29, 1
        %s175 = scalar_lea.sflag [#allocation3], %s174
        %s176 = sand.u32 %s29, 1
        %s177 = smul.addr %s176, 2048
        %s178 = scalar_lea.vmem [#allocation2], %s177
        // Predicated region
        $region33: #{tpu_custom_call.1} parent=31 // pred_check
          %p179 = pneg %p42
        $region34: #{tpu_custom_call.1} parent=31 // pred_check_branch
          %181 = sbr.rel (%p179) target = $region36
        $region35: #{tpu_custom_call.1} parent=31 // pred_region
          %182 = dma.done %s175, 32768
        $region36: #{tpu_custom_call.1} parent=31 // pred_fallthru
          _
        // Predicated region
        $region37: #{tpu_custom_call.1} parent=31 // pred_check
          %p183 = pneg %p84
        $region38: #{tpu_custom_call.1} parent=31 // pred_check_branch
          %185 = sbr.rel (%p183) target = $region40
        $region39: #{tpu_custom_call.1} parent=31 // pred_region
          %186 = dma.done [#allocation6], 1024
        $region40: #{tpu_custom_call.1} parent=31 // pred_fallthru
          _
        %s187 = sand.u32 %s29, 1
        %s188 = scalar_lea.sflag [#allocation3], %s187
        %s189 = sand.u32 %s29, 1
        %s190 = smul.addr %s189, 2048
        %s191 = scalar_lea.vmem [#allocation2], %s190
        %p192 = pneg %p42
        %p193 = pneg %p39
        %p194 = pneg %p63
        %p195 = pneg %p60
        %p196 = pneg %p84
        %p197 = pneg %p81
        %p198 = pneg %p110
        %p199 = pneg %p107
        %s200 = sand.u32 %s97, 1
        %s201 = scalar_lea.sflag [#allocation4], %s200
        %s202 = sand.u32 %s97, 1
        %s203 = smul.addr %s202, 2048
        %s204 = scalar_lea.vmem [#allocation7], %s203
        %s205 = smul.u32 2, %s21
        %s206 = smul.u32 2, %s21
        %v207 = vld [vmem:[%s178] sm:$0xff]
        %v208 = vld [vmem:[%s178 + $0x8] sm:$0xff]
        %v209 = vld [vmem:[%s178 + $0x10] sm:$0xff]
        %v210 = vld [vmem:[%s178 + $0x18] sm:$0xff]
        %v211 = vld [vmem:[%s178 + $0x20] sm:$0xff]
        %v212 = vld [vmem:[%s178 + $0x28] sm:$0xff]
        %v213 = vld [vmem:[%s178 + $0x30] sm:$0xff]
        %v214 = vld [vmem:[%s178 + $0x38] sm:$0xff]
        %v215 = vld [vmem:[%s178 + $0x40] sm:$0xff]
        %v216 = vld [vmem:[%s178 + $0x48] sm:$0xff]
        %v217 = vld [vmem:[%s178 + $0x50] sm:$0xff]
        %v218 = vld [vmem:[%s178 + $0x58] sm:$0xff]
        %v219 = vld [vmem:[%s178 + $0x60] sm:$0xff]
        %v220 = vld [vmem:[%s178 + $0x68] sm:$0xff]
        %v221 = vld [vmem:[%s178 + $0x70] sm:$0xff]
        %v222 = vld [vmem:[%s178 + $0x78] sm:$0xff]
        %v223 = vld [vmem:[%s178 + $0x80] sm:$0xff]
        %v224 = vld [vmem:[%s178 + $0x88] sm:$0xff]
        %v225 = vld [vmem:[%s178 + $0x90] sm:$0xff]
        %v226 = vld [vmem:[%s178 + $0x98] sm:$0xff]
        %v227 = vld [vmem:[%s178 + $0xa0] sm:$0xff]
        %v228 = vld [vmem:[%s178 + $0xa8] sm:$0xff]
        %v229 = vld [vmem:[%s178 + $0xb0] sm:$0xff]
        %v230 = vld [vmem:[%s178 + $0xb8] sm:$0xff]
        %v231 = vld [vmem:[%s178 + $0xc0] sm:$0xff]
        %v232 = vld [vmem:[%s178 + $0xc8] sm:$0xff]
        %v233 = vld [vmem:[%s178 + $0xd0] sm:$0xff]
        %v234 = vld [vmem:[%s178 + $0xd8] sm:$0xff]
        %v235 = vld [vmem:[%s178 + $0xe0] sm:$0xff]
        %v236 = vld [vmem:[%s178 + $0xe8] sm:$0xff]
        %v237 = vld [vmem:[%s178 + $0xf0] sm:$0xff]
        %v238 = vld [vmem:[%s178 + $0xf8] sm:$0xff]
        %v239 = vld [vmem:[%s178 + $0x100] sm:$0xff]
        %v240 = vld [vmem:[%s178 + $0x108] sm:$0xff]
        %v241 = vld [vmem:[%s178 + $0x110] sm:$0xff]
        %v242 = vld [vmem:[%s178 + $0x118] sm:$0xff]
        %v243 = vld [vmem:[%s178 + $0x120] sm:$0xff]
        %v244 = vld [vmem:[%s178 + $0x128] sm:$0xff]
        %v245 = vld [vmem:[%s178 + $0x130] sm:$0xff]
        %v246 = vld [vmem:[%s178 + $0x138] sm:$0xff]
        %v247 = vld [vmem:[%s178 + $0x140] sm:$0xff]
        %v248 = vld [vmem:[%s178 + $0x148] sm:$0xff]
        %v249 = vld [vmem:[%s178 + $0x150] sm:$0xff]
        %v250 = vld [vmem:[%s178 + $0x158] sm:$0xff]
        %v251 = vld [vmem:[%s178 + $0x160] sm:$0xff]
        %v252 = vld [vmem:[%s178 + $0x168] sm:$0xff]
        %v253 = vld [vmem:[%s178 + $0x170] sm:$0xff]
        %v254 = vld [vmem:[%s178 + $0x178] sm:$0xff]
        %v255 = vld [vmem:[%s178 + $0x180] sm:$0xff]
        %v256 = vld [vmem:[%s178 + $0x188] sm:$0xff]
        %v257 = vld [vmem:[%s178 + $0x190] sm:$0xff]
        %v258 = vld [vmem:[%s178 + $0x198] sm:$0xff]
        %v259 = vld [vmem:[%s178 + $0x1a0] sm:$0xff]
        %v260 = vld [vmem:[%s178 + $0x1a8] sm:$0xff]
        %v261 = vld [vmem:[%s178 + $0x1b0] sm:$0xff]
        %v262 = vld [vmem:[%s178 + $0x1b8] sm:$0xff]
        %v263 = vld [vmem:[%s178 + $0x1c0] sm:$0xff]
        %v264 = vld [vmem:[%s178 + $0x1c8] sm:$0xff]
        %v265 = vld [vmem:[%s178 + $0x1d0] sm:$0xff]
        %v266 = vld [vmem:[%s178 + $0x1d8] sm:$0xff]
        %v267 = vld [vmem:[%s178 + $0x1e0] sm:$0xff]
        %v268 = vld [vmem:[%s178 + $0x1e8] sm:$0xff]
        %v269 = vld [vmem:[%s178 + $0x1f0] sm:$0xff]
        %v270 = vld [vmem:[%s178 + $0x1f8] sm:$0xff]
        %v271 = vld [vmem:[%s178 + $0x200] sm:$0xff]
        %v272 = vld [vmem:[%s178 + $0x208] sm:$0xff]
        %v273 = vld [vmem:[%s178 + $0x210] sm:$0xff]
        %v274 = vld [vmem:[%s178 + $0x218] sm:$0xff]
        %v275 = vld [vmem:[%s178 + $0x220] sm:$0xff]
        %v276 = vld [vmem:[%s178 + $0x228] sm:$0xff]
        %v277 = vld [vmem:[%s178 + $0x230] sm:$0xff]
        %v278 = vld [vmem:[%s178 + $0x238] sm:$0xff]
        %v279 = vld [vmem:[%s178 + $0x240] sm:$0xff]
        %v280 = vld [vmem:[%s178 + $0x248] sm:$0xff]
        %v281 = vld [vmem:[%s178 + $0x250] sm:$0xff]
        %v282 = vld [vmem:[%s178 + $0x258] sm:$0xff]
        %v283 = vld [vmem:[%s178 + $0x260] sm:$0xff]
        %v284 = vld [vmem:[%s178 + $0x268] sm:$0xff]
        %v285 = vld [vmem:[%s178 + $0x270] sm:$0xff]
        %v286 = vld [vmem:[%s178 + $0x278] sm:$0xff]
        %v287 = vld [vmem:[%s178 + $0x280] sm:$0xff]
        %v288 = vld [vmem:[%s178 + $0x288] sm:$0xff]
        %v289 = vld [vmem:[%s178 + $0x290] sm:$0xff]
        %v290 = vld [vmem:[%s178 + $0x298] sm:$0xff]
        %v291 = vld [vmem:[%s178 + $0x2a0] sm:$0xff]
        %v292 = vld [vmem:[%s178 + $0x2a8] sm:$0xff]
        %v293 = vld [vmem:[%s178 + $0x2b0] sm:$0xff]
        %v294 = vld [vmem:[%s178 + $0x2b8] sm:$0xff]
        %v295 = vld [vmem:[%s178 + $0x2c0] sm:$0xff]
        %v296 = vld [vmem:[%s178 + $0x2c8] sm:$0xff]
        %v297 = vld [vmem:[%s178 + $0x2d0] sm:$0xff]
        %v298 = vld [vmem:[%s178 + $0x2d8] sm:$0xff]
        %v299 = vld [vmem:[%s178 + $0x2e0] sm:$0xff]
        %v300 = vld [vmem:[%s178 + $0x2e8] sm:$0xff]
        %v301 = vld [vmem:[%s178 + $0x2f0] sm:$0xff]
        %v302 = vld [vmem:[%s178 + $0x2f8] sm:$0xff]
        %v303 = vld [vmem:[%s178 + $0x300] sm:$0xff]
        %v304 = vld [vmem:[%s178 + $0x308] sm:$0xff]
        %v305 = vld [vmem:[%s178 + $0x310] sm:$0xff]
        %v306 = vld [vmem:[%s178 + $0x318] sm:$0xff]
        %v307 = vld [vmem:[%s178 + $0x320] sm:$0xff]
        %v308 = vld [vmem:[%s178 + $0x328] sm:$0xff]
        %v309 = vld [vmem:[%s178 + $0x330] sm:$0xff]
        %v310 = vld [vmem:[%s178 + $0x338] sm:$0xff]
        %v311 = vld [vmem:[%s178 + $0x340] sm:$0xff]
        %v312 = vld [vmem:[%s178 + $0x348] sm:$0xff]
        %v313 = vld [vmem:[%s178 + $0x350] sm:$0xff]
        %v314 = vld [vmem:[%s178 + $0x358] sm:$0xff]
        %v315 = vld [vmem:[%s178 + $0x360] sm:$0xff]
        %v316 = vld [vmem:[%s178 + $0x368] sm:$0xff]
        %v317 = vld [vmem:[%s178 + $0x370] sm:$0xff]
        %v318 = vld [vmem:[%s178 + $0x378] sm:$0xff]
        %v319 = vld [vmem:[%s178 + $0x380] sm:$0xff]
        %v320 = vld [vmem:[%s178 + $0x388] sm:$0xff]
        %v321 = vld [vmem:[%s178 + $0x390] sm:$0xff]
        %v322 = vld [vmem:[%s178 + $0x398] sm:$0xff]
        %v323 = vld [vmem:[%s178 + $0x3a0] sm:$0xff]
        %v324 = vld [vmem:[%s178 + $0x3a8] sm:$0xff]
        %v325 = vld [vmem:[%s178 + $0x3b0] sm:$0xff]
        %v326 = vld [vmem:[%s178 + $0x3b8] sm:$0xff]
        %v327 = vld [vmem:[%s178 + $0x3c0] sm:$0xff]
        %v328 = vld [vmem:[%s178 + $0x3c8] sm:$0xff]
        %v329 = vld [vmem:[%s178 + $0x3d0] sm:$0xff]
        %v330 = vld [vmem:[%s178 + $0x3d8] sm:$0xff]
        %v331 = vld [vmem:[%s178 + $0x3e0] sm:$0xff]
        %v332 = vld [vmem:[%s178 + $0x3e8] sm:$0xff]
        %v333 = vld [vmem:[%s178 + $0x3f0] sm:$0xff]
        %v334 = vld [vmem:[%s178 + $0x3f8] sm:$0xff]
        %v335 = vld [vmem:[%s178 + $0x400] sm:$0xff]
        %v336 = vld [vmem:[%s178 + $0x408] sm:$0xff]
        %v337 = vld [vmem:[%s178 + $0x410] sm:$0xff]
        %v338 = vld [vmem:[%s178 + $0x418] sm:$0xff]
        %v339 = vld [vmem:[%s178 + $0x420] sm:$0xff]
        %v340 = vld [vmem:[%s178 + $0x428] sm:$0xff]
        %v341 = vld [vmem:[%s178 + $0x430] sm:$0xff]
        %v342 = vld [vmem:[%s178 + $0x438] sm:$0xff]
        %v343 = vld [vmem:[%s178 + $0x440] sm:$0xff]
        %v344 = vld [vmem:[%s178 + $0x448] sm:$0xff]
        %v345 = vld [vmem:[%s178 + $0x450] sm:$0xff]
        %v346 = vld [vmem:[%s178 + $0x458] sm:$0xff]
        %v347 = vld [vmem:[%s178 + $0x460] sm:$0xff]
        %v348 = vld [vmem:[%s178 + $0x468] sm:$0xff]
        %v349 = vld [vmem:[%s178 + $0x470] sm:$0xff]
        %v350 = vld [vmem:[%s178 + $0x478] sm:$0xff]
        %v351 = vld [vmem:[%s178 + $0x480] sm:$0xff]
        %v352 = vld [vmem:[%s178 + $0x488] sm:$0xff]
        %v353 = vld [vmem:[%s178 + $0x490] sm:$0xff]
        %v354 = vld [vmem:[%s178 + $0x498] sm:$0xff]
        %v355 = vld [vmem:[%s178 + $0x4a0] sm:$0xff]
        %v356 = vld [vmem:[%s178 + $0x4a8] sm:$0xff]
        %v357 = vld [vmem:[%s178 + $0x4b0] sm:$0xff]
        %v358 = vld [vmem:[%s178 + $0x4b8] sm:$0xff]
        %v359 = vld [vmem:[%s178 + $0x4c0] sm:$0xff]
        %v360 = vld [vmem:[%s178 + $0x4c8] sm:$0xff]
        %v361 = vld [vmem:[%s178 + $0x4d0] sm:$0xff]
        %v362 = vld [vmem:[%s178 + $0x4d8] sm:$0xff]
        %v363 = vld [vmem:[%s178 + $0x4e0] sm:$0xff]
        %v364 = vld [vmem:[%s178 + $0x4e8] sm:$0xff]
        %v365 = vld [vmem:[%s178 + $0x4f0] sm:$0xff]
        %v366 = vld [vmem:[%s178 + $0x4f8] sm:$0xff]
        %v367 = vld [vmem:[%s178 + $0x500] sm:$0xff]
        %v368 = vld [vmem:[%s178 + $0x508] sm:$0xff]
        %v369 = vld [vmem:[%s178 + $0x510] sm:$0xff]
        %v370 = vld [vmem:[%s178 + $0x518] sm:$0xff]
        %v371 = vld [vmem:[%s178 + $0x520] sm:$0xff]
        %v372 = vld [vmem:[%s178 + $0x528] sm:$0xff]
        %v373 = vld [vmem:[%s178 + $0x530] sm:$0xff]
        %v374 = vld [vmem:[%s178 + $0x538] sm:$0xff]
        %v375 = vld [vmem:[%s178 + $0x540] sm:$0xff]
        %v376 = vld [vmem:[%s178 + $0x548] sm:$0xff]
        %v377 = vld [vmem:[%s178 + $0x550] sm:$0xff]
        %v378 = vld [vmem:[%s178 + $0x558] sm:$0xff]
        %v379 = vld [vmem:[%s178 + $0x560] sm:$0xff]
        %v380 = vld [vmem:[%s178 + $0x568] sm:$0xff]
        %v381 = vld [vmem:[%s178 + $0x570] sm:$0xff]
        %v382 = vld [vmem:[%s178 + $0x578] sm:$0xff]
        %v383 = vld [vmem:[%s178 + $0x580] sm:$0xff]
        %v384 = vld [vmem:[%s178 + $0x588] sm:$0xff]
        %v385 = vld [vmem:[%s178 + $0x590] sm:$0xff]
        %v386 = vld [vmem:[%s178 + $0x598] sm:$0xff]
        %v387 = vld [vmem:[%s178 + $0x5a0] sm:$0xff]
        %v388 = vld [vmem:[%s178 + $0x5a8] sm:$0xff]
        %v389 = vld [vmem:[%s178 + $0x5b0] sm:$0xff]
        %v390 = vld [vmem:[%s178 + $0x5b8] sm:$0xff]
        %v391 = vld [vmem:[%s178 + $0x5c0] sm:$0xff]
        %v392 = vld [vmem:[%s178 + $0x5c8] sm:$0xff]
        %v393 = vld [vmem:[%s178 + $0x5d0] sm:$0xff]
        %v394 = vld [vmem:[%s178 + $0x5d8] sm:$0xff]
        %v395 = vld [vmem:[%s178 + $0x5e0] sm:$0xff]
        %v396 = vld [vmem:[%s178 + $0x5e8] sm:$0xff]
        %v397 = vld [vmem:[%s178 + $0x5f0] sm:$0xff]
        %v398 = vld [vmem:[%s178 + $0x5f8] sm:$0xff]
        %v399 = vld [vmem:[%s178 + $0x600] sm:$0xff]
        %v400 = vld [vmem:[%s178 + $0x608] sm:$0xff]
        %v401 = vld [vmem:[%s178 + $0x610] sm:$0xff]
        %v402 = vld [vmem:[%s178 + $0x618] sm:$0xff]
        %v403 = vld [vmem:[%s178 + $0x620] sm:$0xff]
        %v404 = vld [vmem:[%s178 + $0x628] sm:$0xff]
        %v405 = vld [vmem:[%s178 + $0x630] sm:$0xff]
        %v406 = vld [vmem:[%s178 + $0x638] sm:$0xff]
        %v407 = vld [vmem:[%s178 + $0x640] sm:$0xff]
        %v408 = vld [vmem:[%s178 + $0x648] sm:$0xff]
        %v409 = vld [vmem:[%s178 + $0x650] sm:$0xff]
        %v410 = vld [vmem:[%s178 + $0x658] sm:$0xff]
        %v411 = vld [vmem:[%s178 + $0x660] sm:$0xff]
        %v412 = vld [vmem:[%s178 + $0x668] sm:$0xff]
        %v413 = vld [vmem:[%s178 + $0x670] sm:$0xff]
        %v414 = vld [vmem:[%s178 + $0x678] sm:$0xff]
        %v415 = vld [vmem:[%s178 + $0x680] sm:$0xff]
        %v416 = vld [vmem:[%s178 + $0x688] sm:$0xff]
        %v417 = vld [vmem:[%s178 + $0x690] sm:$0xff]
        %v418 = vld [vmem:[%s178 + $0x698] sm:$0xff]
        %v419 = vld [vmem:[%s178 + $0x6a0] sm:$0xff]
        %v420 = vld [vmem:[%s178 + $0x6a8] sm:$0xff]
        %v421 = vld [vmem:[%s178 + $0x6b0] sm:$0xff]
        %v422 = vld [vmem:[%s178 + $0x6b8] sm:$0xff]
        %v423 = vld [vmem:[%s178 + $0x6c0] sm:$0xff]
        %v424 = vld [vmem:[%s178 + $0x6c8] sm:$0xff]
        %v425 = vld [vmem:[%s178 + $0x6d0] sm:$0xff]
        %v426 = vld [vmem:[%s178 + $0x6d8] sm:$0xff]
        %v427 = vld [vmem:[%s178 + $0x6e0] sm:$0xff]
        %v428 = vld [vmem:[%s178 + $0x6e8] sm:$0xff]
        %v429 = vld [vmem:[%s178 + $0x6f0] sm:$0xff]
        %v430 = vld [vmem:[%s178 + $0x6f8] sm:$0xff]
        %v431 = vld [vmem:[%s178 + $0x700] sm:$0xff]
        %v432 = vld [vmem:[%s178 + $0x708] sm:$0xff]
        %v433 = vld [vmem:[%s178 + $0x710] sm:$0xff]
        %v434 = vld [vmem:[%s178 + $0x718] sm:$0xff]
        %v435 = vld [vmem:[%s178 + $0x720] sm:$0xff]
        %v436 = vld [vmem:[%s178 + $0x728] sm:$0xff]
        %v437 = vld [vmem:[%s178 + $0x730] sm:$0xff]
        %v438 = vld [vmem:[%s178 + $0x738] sm:$0xff]
        %v439 = vld [vmem:[%s178 + $0x740] sm:$0xff]
        %v440 = vld [vmem:[%s178 + $0x748] sm:$0xff]
        %v441 = vld [vmem:[%s178 + $0x750] sm:$0xff]
        %v442 = vld [vmem:[%s178 + $0x758] sm:$0xff]
        %v443 = vld [vmem:[%s178 + $0x760] sm:$0xff]
        %v444 = vld [vmem:[%s178 + $0x768] sm:$0xff]
        %v445 = vld [vmem:[%s178 + $0x770] sm:$0xff]
        %v446 = vld [vmem:[%s178 + $0x778] sm:$0xff]
        %v447 = vld [vmem:[%s178 + $0x780] sm:$0xff]
        %v448 = vld [vmem:[%s178 + $0x788] sm:$0xff]
        %v449 = vld [vmem:[%s178 + $0x790] sm:$0xff]
        %v450 = vld [vmem:[%s178 + $0x798] sm:$0xff]
        %v451 = vld [vmem:[%s178 + $0x7a0] sm:$0xff]
        %v452 = vld [vmem:[%s178 + $0x7a8] sm:$0xff]
        %v453 = vld [vmem:[%s178 + $0x7b0] sm:$0xff]
        %v454 = vld [vmem:[%s178 + $0x7b8] sm:$0xff]
        %v455 = vld [vmem:[%s178 + $0x7c0] sm:$0xff]
        %v456 = vld [vmem:[%s178 + $0x7c8] sm:$0xff]
        %v457 = vld [vmem:[%s178 + $0x7d0] sm:$0xff]
        %v458 = vld [vmem:[%s178 + $0x7d8] sm:$0xff]
        %v459 = vld [vmem:[%s178 + $0x7e0] sm:$0xff]
        %v460 = vld [vmem:[%s178 + $0x7e8] sm:$0xff]
        %v461 = vld [vmem:[%s178 + $0x7f0] sm:$0xff]
        %v462 = vld [vmem:[%s178 + $0x7f8] sm:$0xff]
        %v463 = vadd.f32 %v207, %v208
        %v464 = vadd.f32 %v463, %v209
        %v465 = vadd.f32 %v464, %v210
        %466 = vadd.xlane.f32.xlu0 %v465
        %v467 = vpop.xlane.xlu0 %466
        %v468 = vadd.f32 %v211, %v212
        %v469 = vadd.f32 %v468, %v213
        %v470 = vadd.f32 %v469, %v214
        %471 = vadd.xlane.f32.xlu0 %v470
        %v472 = vpop.xlane.xlu0 %471
        %v473 = vadd.f32 %v215, %v216
        %v474 = vadd.f32 %v473, %v217
        %v475 = vadd.f32 %v474, %v218
        %476 = vadd.xlane.f32.xlu0 %v475
        %v477 = vpop.xlane.xlu0 %476
        %v478 = vadd.f32 %v219, %v220
        %v479 = vadd.f32 %v478, %v221
        %v480 = vadd.f32 %v479, %v222
        %481 = vadd.xlane.f32.xlu0 %v480
        %v482 = vpop.xlane.xlu0 %481
        %v483 = vadd.f32 %v223, %v224
        %v484 = vadd.f32 %v483, %v225
        %v485 = vadd.f32 %v484, %v226
        %486 = vadd.xlane.f32.xlu0 %v485
        %v487 = vpop.xlane.xlu0 %486
        %v488 = vadd.f32 %v227, %v228
        %v489 = vadd.f32 %v488, %v229
        %v490 = vadd.f32 %v489, %v230
        %491 = vadd.xlane.f32.xlu0 %v490
        %v492 = vpop.xlane.xlu0 %491
        %v493 = vadd.f32 %v231, %v232
        %v494 = vadd.f32 %v493, %v233
        %v495 = vadd.f32 %v494, %v234
        %496 = vadd.xlane.f32.xlu0 %v495
        %v497 = vpop.xlane.xlu0 %496
        %v498 = vadd.f32 %v235, %v236
        %v499 = vadd.f32 %v498, %v237
        %v500 = vadd.f32 %v499, %v238
        %501 = vadd.xlane.f32.xlu0 %v500
        %v502 = vpop.xlane.xlu0 %501
        %v503 = vadd.f32 %v239, %v240
        %v504 = vadd.f32 %v503, %v241
        %v505 = vadd.f32 %v504, %v242
        %506 = vadd.xlane.f32.xlu0 %v505
        %v507 = vpop.xlane.xlu0 %506
        %v508 = vadd.f32 %v243, %v244
        %v509 = vadd.f32 %v508, %v245
        %v510 = vadd.f32 %v509, %v246
        %511 = vadd.xlane.f32.xlu0 %v510
        %v512 = vpop.xlane.xlu0 %511
        %v513 = vadd.f32 %v247, %v248
        %v514 = vadd.f32 %v513, %v249
        %v515 = vadd.f32 %v514, %v250
        %516 = vadd.xlane.f32.xlu0 %v515
        %v517 = vpop.xlane.xlu0 %516
        %v518 = vadd.f32 %v251, %v252
        %v519 = vadd.f32 %v518, %v253
        %v520 = vadd.f32 %v519, %v254
        %521 = vadd.xlane.f32.xlu0 %v520
        %v522 = vpop.xlane.xlu0 %521
        %v523 = vadd.f32 %v255, %v256
        %v524 = vadd.f32 %v523, %v257
        %v525 = vadd.f32 %v524, %v258
        %526 = vadd.xlane.f32.xlu0 %v525
        %v527 = vpop.xlane.xlu0 %526
        %v528 = vadd.f32 %v259, %v260
        %v529 = vadd.f32 %v528, %v261
        %v530 = vadd.f32 %v529, %v262
        %531 = vadd.xlane.f32.xlu0 %v530
        %v532 = vpop.xlane.xlu0 %531
        %v533 = vadd.f32 %v263, %v264
        %v534 = vadd.f32 %v533, %v265
        %v535 = vadd.f32 %v534, %v266
        %536 = vadd.xlane.f32.xlu0 %v535
        %v537 = vpop.xlane.xlu0 %536
        %v538 = vadd.f32 %v267, %v268
        %v539 = vadd.f32 %v538, %v269
        %v540 = vadd.f32 %v539, %v270
        %541 = vadd.xlane.f32.xlu0 %v540
        %v542 = vpop.xlane.xlu0 %541
        %v543 = vadd.f32 %v271, %v272
        %v544 = vadd.f32 %v543, %v273
        %v545 = vadd.f32 %v544, %v274
        %546 = vadd.xlane.f32.xlu0 %v545
        %v547 = vpop.xlane.xlu0 %546
        %v548 = vadd.f32 %v275, %v276
        %v549 = vadd.f32 %v548, %v277
        %v550 = vadd.f32 %v549, %v278
        %551 = vadd.xlane.f32.xlu0 %v550
        %v552 = vpop.xlane.xlu0 %551
        %v553 = vadd.f32 %v279, %v280
        %v554 = vadd.f32 %v553, %v281
        %v555 = vadd.f32 %v554, %v282
        %556 = vadd.xlane.f32.xlu0 %v555
        %v557 = vpop.xlane.xlu0 %556
        %v558 = vadd.f32 %v283, %v284
        %v559 = vadd.f32 %v558, %v285
        %v560 = vadd.f32 %v559, %v286
        %561 = vadd.xlane.f32.xlu0 %v560
        %v562 = vpop.xlane.xlu0 %561
        %v563 = vadd.f32 %v287, %v288
        %v564 = vadd.f32 %v563, %v289
        %v565 = vadd.f32 %v564, %v290
        %566 = vadd.xlane.f32.xlu0 %v565
        %v567 = vpop.xlane.xlu0 %566
        %v568 = vadd.f32 %v291, %v292
        %v569 = vadd.f32 %v568, %v293
        %v570 = vadd.f32 %v569, %v294
        %571 = vadd.xlane.f32.xlu0 %v570
        %v572 = vpop.xlane.xlu0 %571
        %v573 = vadd.f32 %v295, %v296
        %v574 = vadd.f32 %v573, %v297
        %v575 = vadd.f32 %v574, %v298
        %576 = vadd.xlane.f32.xlu0 %v575
        %v577 = vpop.xlane.xlu0 %576
        %v578 = vadd.f32 %v299, %v300
        %v579 = vadd.f32 %v578, %v301
        %v580 = vadd.f32 %v579, %v302
        %581 = vadd.xlane.f32.xlu0 %v580
        %v582 = vpop.xlane.xlu0 %581
        %v583 = vadd.f32 %v303, %v304
        %v584 = vadd.f32 %v583, %v305
        %v585 = vadd.f32 %v584, %v306
        %586 = vadd.xlane.f32.xlu0 %v585
        %v587 = vpop.xlane.xlu0 %586
        %v588 = vadd.f32 %v307, %v308
        %v589 = vadd.f32 %v588, %v309
        %v590 = vadd.f32 %v589, %v310
        %591 = vadd.xlane.f32.xlu0 %v590
        %v592 = vpop.xlane.xlu0 %591
        %v593 = vadd.f32 %v311, %v312
        %v594 = vadd.f32 %v593, %v313
        %v595 = vadd.f32 %v594, %v314
        %596 = vadd.xlane.f32.xlu0 %v595
        %v597 = vpop.xlane.xlu0 %596
        %v598 = vadd.f32 %v315, %v316
        %v599 = vadd.f32 %v598, %v317
        %v600 = vadd.f32 %v599, %v318
        %601 = vadd.xlane.f32.xlu0 %v600
        %v602 = vpop.xlane.xlu0 %601
        %v603 = vadd.f32 %v319, %v320
        %v604 = vadd.f32 %v603, %v321
        %v605 = vadd.f32 %v604, %v322
        %606 = vadd.xlane.f32.xlu0 %v605
        %v607 = vpop.xlane.xlu0 %606
        %v608 = vadd.f32 %v323, %v324
        %v609 = vadd.f32 %v608, %v325
        %v610 = vadd.f32 %v609, %v326
        %611 = vadd.xlane.f32.xlu0 %v610
        %v612 = vpop.xlane.xlu0 %611
        %v613 = vadd.f32 %v327, %v328
        %v614 = vadd.f32 %v613, %v329
        %v615 = vadd.f32 %v614, %v330
        %616 = vadd.xlane.f32.xlu0 %v615
        %v617 = vpop.xlane.xlu0 %616
        %v618 = vadd.f32 %v331, %v332
        %v619 = vadd.f32 %v618, %v333
        %v620 = vadd.f32 %v619, %v334
        %621 = vadd.xlane.f32.xlu0 %v620
        %v622 = vpop.xlane.xlu0 %621
        %v623 = vadd.f32 %v335, %v336
        %v624 = vadd.f32 %v623, %v337
        %v625 = vadd.f32 %v624, %v338
        %626 = vadd.xlane.f32.xlu0 %v625
        %v627 = vpop.xlane.xlu0 %626
        %v628 = vadd.f32 %v339, %v340
        %v629 = vadd.f32 %v628, %v341
        %v630 = vadd.f32 %v629, %v342
        %631 = vadd.xlane.f32.xlu0 %v630
        %v632 = vpop.xlane.xlu0 %631
        %v633 = vadd.f32 %v343, %v344
        %v634 = vadd.f32 %v633, %v345
        %v635 = vadd.f32 %v634, %v346
        %636 = vadd.xlane.f32.xlu0 %v635
        %v637 = vpop.xlane.xlu0 %636
        %v638 = vadd.f32 %v347, %v348
        %v639 = vadd.f32 %v638, %v349
        %v640 = vadd.f32 %v639, %v350
        %641 = vadd.xlane.f32.xlu0 %v640
        %v642 = vpop.xlane.xlu0 %641
        %v643 = vadd.f32 %v351, %v352
        %v644 = vadd.f32 %v643, %v353
        %v645 = vadd.f32 %v644, %v354
        %646 = vadd.xlane.f32.xlu0 %v645
        %v647 = vpop.xlane.xlu0 %646
        %v648 = vadd.f32 %v355, %v356
        %v649 = vadd.f32 %v648, %v357
        %v650 = vadd.f32 %v649, %v358
        %651 = vadd.xlane.f32.xlu0 %v650
        %v652 = vpop.xlane.xlu0 %651
        %v653 = vadd.f32 %v359, %v360
        %v654 = vadd.f32 %v653, %v361
        %v655 = vadd.f32 %v654, %v362
        %656 = vadd.xlane.f32.xlu0 %v655
        %v657 = vpop.xlane.xlu0 %656
        %v658 = vadd.f32 %v363, %v364
        %v659 = vadd.f32 %v658, %v365
        %v660 = vadd.f32 %v659, %v366
        %661 = vadd.xlane.f32.xlu0 %v660
        %v662 = vpop.xlane.xlu0 %661
        %v663 = vadd.f32 %v367, %v368
        %v664 = vadd.f32 %v663, %v369
        %v665 = vadd.f32 %v664, %v370
        %666 = vadd.xlane.f32.xlu0 %v665
        %v667 = vpop.xlane.xlu0 %666
        %v668 = vadd.f32 %v371, %v372
        %v669 = vadd.f32 %v668, %v373
        %v670 = vadd.f32 %v669, %v374
        %671 = vadd.xlane.f32.xlu0 %v670
        %v672 = vpop.xlane.xlu0 %671
        %v673 = vadd.f32 %v375, %v376
        %v674 = vadd.f32 %v673, %v377
        %v675 = vadd.f32 %v674, %v378
        %676 = vadd.xlane.f32.xlu0 %v675
        %v677 = vpop.xlane.xlu0 %676
        %v678 = vadd.f32 %v379, %v380
        %v679 = vadd.f32 %v678, %v381
        %v680 = vadd.f32 %v679, %v382
        %681 = vadd.xlane.f32.xlu0 %v680
        %v682 = vpop.xlane.xlu0 %681
        %v683 = vadd.f32 %v383, %v384
        %v684 = vadd.f32 %v683, %v385
        %v685 = vadd.f32 %v684, %v386
        %686 = vadd.xlane.f32.xlu0 %v685
        %v687 = vpop.xlane.xlu0 %686
        %v688 = vadd.f32 %v387, %v388
        %v689 = vadd.f32 %v688, %v389
        %v690 = vadd.f32 %v689, %v390
        %691 = vadd.xlane.f32.xlu0 %v690
        %v692 = vpop.xlane.xlu0 %691
        %v693 = vadd.f32 %v391, %v392
        %v694 = vadd.f32 %v693, %v393
        %v695 = vadd.f32 %v694, %v394
        %696 = vadd.xlane.f32.xlu0 %v695
        %v697 = vpop.xlane.xlu0 %696
        %v698 = vadd.f32 %v395, %v396
        %v699 = vadd.f32 %v698, %v397
        %v700 = vadd.f32 %v699, %v398
        %701 = vadd.xlane.f32.xlu0 %v700
        %v702 = vpop.xlane.xlu0 %701
        %v703 = vadd.f32 %v399, %v400
        %v704 = vadd.f32 %v703, %v401
        %v705 = vadd.f32 %v704, %v402
        %706 = vadd.xlane.f32.xlu0 %v705
        %v707 = vpop.xlane.xlu0 %706
        %v708 = vadd.f32 %v403, %v404
        %v709 = vadd.f32 %v708, %v405
        %v710 = vadd.f32 %v709, %v406
        %711 = vadd.xlane.f32.xlu0 %v710
        %v712 = vpop.xlane.xlu0 %711
        %v713 = vadd.f32 %v407, %v408
        %v714 = vadd.f32 %v713, %v409
        %v715 = vadd.f32 %v714, %v410
        %716 = vadd.xlane.f32.xlu0 %v715
        %v717 = vpop.xlane.xlu0 %716
        %v718 = vadd.f32 %v411, %v412
        %v719 = vadd.f32 %v718, %v413
        %v720 = vadd.f32 %v719, %v414
        %721 = vadd.xlane.f32.xlu0 %v720
        %v722 = vpop.xlane.xlu0 %721
        %v723 = vadd.f32 %v415, %v416
        %v724 = vadd.f32 %v723, %v417
        %v725 = vadd.f32 %v724, %v418
        %726 = vadd.xlane.f32.xlu0 %v725
        %v727 = vpop.xlane.xlu0 %726
        %v728 = vadd.f32 %v419, %v420
        %v729 = vadd.f32 %v728, %v421
        %v730 = vadd.f32 %v729, %v422
        %731 = vadd.xlane.f32.xlu0 %v730
        %v732 = vpop.xlane.xlu0 %731
        %v733 = vadd.f32 %v423, %v424
        %v734 = vadd.f32 %v733, %v425
        %v735 = vadd.f32 %v734, %v426
        %736 = vadd.xlane.f32.xlu0 %v735
        %v737 = vpop.xlane.xlu0 %736
        %v738 = vadd.f32 %v427, %v428
        %v739 = vadd.f32 %v738, %v429
        %v740 = vadd.f32 %v739, %v430
        %741 = vadd.xlane.f32.xlu0 %v740
        %v742 = vpop.xlane.xlu0 %741
        %v743 = vadd.f32 %v431, %v432
        %v744 = vadd.f32 %v743, %v433
        %v745 = vadd.f32 %v744, %v434
        %746 = vadd.xlane.f32.xlu0 %v745
        %v747 = vpop.xlane.xlu0 %746
        %v748 = vadd.f32 %v435, %v436
        %v749 = vadd.f32 %v748, %v437
        %v750 = vadd.f32 %v749, %v438
        %751 = vadd.xlane.f32.xlu0 %v750
        %v752 = vpop.xlane.xlu0 %751
        %v753 = vadd.f32 %v439, %v440
        %v754 = vadd.f32 %v753, %v441
        %v755 = vadd.f32 %v754, %v442
        %756 = vadd.xlane.f32.xlu0 %v755
        %v757 = vpop.xlane.xlu0 %756
        %v758 = vadd.f32 %v443, %v444
        %v759 = vadd.f32 %v758, %v445
        %v760 = vadd.f32 %v759, %v446
        %761 = vadd.xlane.f32.xlu0 %v760
        %v762 = vpop.xlane.xlu0 %761
        %v763 = vadd.f32 %v447, %v448
        %v764 = vadd.f32 %v763, %v449
        %v765 = vadd.f32 %v764, %v450
        %766 = vadd.xlane.f32.xlu0 %v765
        %v767 = vpop.xlane.xlu0 %766
        %v768 = vadd.f32 %v451, %v452
        %v769 = vadd.f32 %v768, %v453
        %v770 = vadd.f32 %v769, %v454
        %771 = vadd.xlane.f32.xlu0 %v770
        %v772 = vpop.xlane.xlu0 %771
        %v773 = vadd.f32 %v455, %v456
        %v774 = vadd.f32 %v773, %v457
        %v775 = vadd.f32 %v774, %v458
        %776 = vadd.xlane.f32.xlu0 %v775
        %v777 = vpop.xlane.xlu0 %776
        %v778 = vadd.f32 %v459, %v460
        %v779 = vadd.f32 %v778, %v461
        %v780 = vadd.f32 %v779, %v462
        %781 = vadd.xlane.f32.xlu0 %v780
        %v782 = vpop.xlane.xlu0 %781
        %v783 = vmul.f32 %v467, 0.001953125
        %v784 = vmul.f32 %v472, 0.001953125
        %v785 = vmul.f32 %v477, 0.001953125
        %v786 = vmul.f32 %v482, 0.001953125
        %v787 = vmul.f32 %v487, 0.001953125
        %v788 = vmul.f32 %v492, 0.001953125
        %v789 = vmul.f32 %v497, 0.001953125
        %v790 = vmul.f32 %v502, 0.001953125
        %v791 = vmul.f32 %v507, 0.001953125
        %v792 = vmul.f32 %v512, 0.001953125
        %v793 = vmul.f32 %v517, 0.001953125
        %v794 = vmul.f32 %v522, 0.001953125
        %v795 = vmul.f32 %v527, 0.001953125
        %v796 = vmul.f32 %v532, 0.001953125
        %v797 = vmul.f32 %v537, 0.001953125
        %v798 = vmul.f32 %v542, 0.001953125
        %v799 = vmul.f32 %v547, 0.001953125
        %v800 = vmul.f32 %v552, 0.001953125
        %v801 = vmul.f32 %v557, 0.001953125
        %v802 = vmul.f32 %v562, 0.001953125
        %v803 = vmul.f32 %v567, 0.001953125
        %v804 = vmul.f32 %v572, 0.001953125
        %v805 = vmul.f32 %v577, 0.001953125
        %v806 = vmul.f32 %v582, 0.001953125
        %v807 = vmul.f32 %v587, 0.001953125
        %v808 = vmul.f32 %v592, 0.001953125
        %v809 = vmul.f32 %v597, 0.001953125
        %v810 = vmul.f32 %v602, 0.001953125
        %v811 = vmul.f32 %v607, 0.001953125
        %v812 = vmul.f32 %v612, 0.001953125
        %v813 = vmul.f32 %v617, 0.001953125
        %v814 = vmul.f32 %v622, 0.001953125
        %v815 = vmul.f32 %v627, 0.001953125
        %v816 = vmul.f32 %v632, 0.001953125
        %v817 = vmul.f32 %v637, 0.001953125
        %v818 = vmul.f32 %v642, 0.001953125
        %v819 = vmul.f32 %v647, 0.001953125
        %v820 = vmul.f32 %v652, 0.001953125
        %v821 = vmul.f32 %v657, 0.001953125
        %v822 = vmul.f32 %v662, 0.001953125
        %v823 = vmul.f32 %v667, 0.001953125
        %v824 = vmul.f32 %v672, 0.001953125
        %v825 = vmul.f32 %v677, 0.001953125
        %v826 = vmul.f32 %v682, 0.001953125
        %v827 = vmul.f32 %v687, 0.001953125
        %v828 = vmul.f32 %v692, 0.001953125
        %v829 = vmul.f32 %v697, 0.001953125
        %v830 = vmul.f32 %v702, 0.001953125
        %v831 = vmul.f32 %v707, 0.001953125
        %v832 = vmul.f32 %v712, 0.001953125
        %v833 = vmul.f32 %v717, 0.001953125
        %v834 = vmul.f32 %v722, 0.001953125
        %v835 = vmul.f32 %v727, 0.001953125
        %v836 = vmul.f32 %v732, 0.001953125
        %v837 = vmul.f32 %v737, 0.001953125
        %v838 = vmul.f32 %v742, 0.001953125
        %v839 = vmul.f32 %v747, 0.001953125
        %v840 = vmul.f32 %v752, 0.001953125
        %v841 = vmul.f32 %v757, 0.001953125
        %v842 = vmul.f32 %v762, 0.001953125
        %v843 = vmul.f32 %v767, 0.001953125
        %v844 = vmul.f32 %v772, 0.001953125
        %v845 = vmul.f32 %v777, 0.001953125
        %v846 = vmul.f32 %v782, 0.001953125
        %v847 = vld [vmem:[%s1] sm:$0xff]
        %v848 = vld [vmem:[%s1 + $0x8] sm:$0xff]
        %v849 = vld [vmem:[%s1 + $0x10] sm:$0xff]
        %v850 = vld [vmem:[%s1 + $0x18] sm:$0xff]
        %v851 = vld [vmem:[%s1 + $0x20] sm:$0xff]
        %v852 = vld [vmem:[%s1 + $0x28] sm:$0xff]
        %v853 = vld [vmem:[%s1 + $0x30] sm:$0xff]
        %v854 = vld [vmem:[%s1 + $0x38] sm:$0xff]
        %v855 = vld [vmem:[%s1 + $0x40] sm:$0xff]
        %v856 = vld [vmem:[%s1 + $0x48] sm:$0xff]
        %v857 = vld [vmem:[%s1 + $0x50] sm:$0xff]
        %v858 = vld [vmem:[%s1 + $0x58] sm:$0xff]
        %v859 = vld [vmem:[%s1 + $0x60] sm:$0xff]
        %v860 = vld [vmem:[%s1 + $0x68] sm:$0xff]
        %v861 = vld [vmem:[%s1 + $0x70] sm:$0xff]
        %v862 = vld [vmem:[%s1 + $0x78] sm:$0xff]
        %v863 = vld [vmem:[%s1 + $0x80] sm:$0xff]
        %v864 = vld [vmem:[%s1 + $0x88] sm:$0xff]
        %v865 = vld [vmem:[%s1 + $0x90] sm:$0xff]
        %v866 = vld [vmem:[%s1 + $0x98] sm:$0xff]
        %v867 = vld [vmem:[%s1 + $0xa0] sm:$0xff]
        %v868 = vld [vmem:[%s1 + $0xa8] sm:$0xff]
        %v869 = vld [vmem:[%s1 + $0xb0] sm:$0xff]
        %v870 = vld [vmem:[%s1 + $0xb8] sm:$0xff]
        %v871 = vld [vmem:[%s1 + $0xc0] sm:$0xff]
        %v872 = vld [vmem:[%s1 + $0xc8] sm:$0xff]
        %v873 = vld [vmem:[%s1 + $0xd0] sm:$0xff]
        %v874 = vld [vmem:[%s1 + $0xd8] sm:$0xff]
        %v875 = vld [vmem:[%s1 + $0xe0] sm:$0xff]
        %v876 = vld [vmem:[%s1 + $0xe8] sm:$0xff]
        %v877 = vld [vmem:[%s1 + $0xf0] sm:$0xff]
        %v878 = vld [vmem:[%s1 + $0xf8] sm:$0xff]
        %v943 = vlaneseq
        %v944 = vand.u32 %v943, 127
        %v945 = vlaneseq
        %v946 = vshrl.u32 %v945, 7
        %v947 = vsub.s32 %v944, %v946
        %v948 = vrot.slane %v783, %v947
        %v949 = vadd.s32 %v944, 4294967288
        %v950 = vlaneseq
        %v951 = vshrl.u32 %v950, 7
        %v952 = vsub.s32 %v949, %v951
        %v953 = vrot.slane %v784, %v952
        %vm954 = vcmask 130112
        %v955 = vsel %vm954, %v953, %v948
        %v956 = vadd.s32 %v944, 4294967280
        %v957 = vlaneseq
        %v958 = vshrl.u32 %v957, 7
        %v959 = vsub.s32 %v956, %v958
        %v960 = vrot.slane %v785, %v959
        %vm961 = vcmask 195712
        %v962 = vsel %vm961, %v960, %v955
        %v963 = vadd.s32 %v944, 4294967272
        %v964 = vlaneseq
        %v965 = vshrl.u32 %v964, 7
        %v966 = vsub.s32 %v963, %v965
        %v967 = vrot.slane %v786, %v966
        %vm968 = vcmask 261312
        %v969 = vsel %vm968, %v967, %v962
        %v970 = vadd.s32 %v944, 4294967264
        %v971 = vlaneseq
        %v972 = vshrl.u32 %v971, 7
        %v973 = vsub.s32 %v970, %v972
        %v974 = vrot.slane %v787, %v973
        %vm975 = vcmask 326912
        %v976 = vsel %vm975, %v974, %v969
        %v977 = vadd.s32 %v944, 4294967256
        %v978 = vlaneseq
        %v979 = vshrl.u32 %v978, 7
        %v980 = vsub.s32 %v977, %v979
        %v981 = vrot.slane %v788, %v980
        %vm982 = vcmask 392512
        %v983 = vsel %vm982, %v981, %v976
        %v984 = vadd.s32 %v944, 4294967248
        %v985 = vlaneseq
        %v986 = vshrl.u32 %v985, 7
        %v987 = vsub.s32 %v984, %v986
        %v988 = vrot.slane %v789, %v987
        %vm989 = vcmask 458112
        %v990 = vsel %vm989, %v988, %v983
        %v991 = vadd.s32 %v944, 4294967240
        %v992 = vlaneseq
        %v993 = vshrl.u32 %v992, 7
        %v994 = vsub.s32 %v991, %v993
        %v995 = vrot.slane %v790, %v994
        %vm996 = vcmask 523712
        %v997 = vsel %vm996, %v995, %v990
        %v998 = vadd.s32 %v944, 4294967232
        %v999 = vlaneseq
        %v1000 = vshrl.u32 %v999, 7
        %v1001 = vsub.s32 %v998, %v1000
        %v1002 = vrot.slane %v791, %v1001
        %vm1003 = vcmask 589312
        %v1004 = vsel %vm1003, %v1002, %v997
        %v1005 = vadd.s32 %v944, 4294967224
        %v1006 = vlaneseq
        %v1007 = vshrl.u32 %v1006, 7
        %v1008 = vsub.s32 %v1005, %v1007
        %v1009 = vrot.slane %v792, %v1008
        %vm1010 = vcmask 654912
        %v1011 = vsel %vm1010, %v1009, %v1004
        %v1012 = vadd.s32 %v944, 4294967216
        %v1013 = vlaneseq
        %v1014 = vshrl.u32 %v1013, 7
        %v1015 = vsub.s32 %v1012, %v1014
        %v1016 = vrot.slane %v793, %v1015
        %vm1017 = vcmask 720512
        %v1018 = vsel %vm1017, %v1016, %v1011
        %v1019 = vadd.s32 %v944, 4294967208
        %v1020 = vlaneseq
        %v1021 = vshrl.u32 %v1020, 7
        %v1022 = vsub.s32 %v1019, %v1021
        %v1023 = vrot.slane %v794, %v1022
        %vm1024 = vcmask 786112
        %v1025 = vsel %vm1024, %v1023, %v1018
        %v1026 = vadd.s32 %v944, 4294967200
        %v1027 = vlaneseq
        %v1028 = vshrl.u32 %v1027, 7
        %v1029 = vsub.s32 %v1026, %v1028
        %v1030 = vrot.slane %v795, %v1029
        %vm1031 = vcmask 851712
        %v1032 = vsel %vm1031, %v1030, %v1025
        %v1033 = vadd.s32 %v944, 4294967192
        %v1034 = vlaneseq
        %v1035 = vshrl.u32 %v1034, 7
        %v1036 = vsub.s32 %v1033, %v1035
        %v1037 = vrot.slane %v796, %v1036
        %vm1038 = vcmask 917312
        %v1039 = vsel %vm1038, %v1037, %v1032
        %v1040 = vadd.s32 %v944, 4294967184
        %v1041 = vlaneseq
        %v1042 = vshrl.u32 %v1041, 7
        %v1043 = vsub.s32 %v1040, %v1042
        %v1044 = vrot.slane %v797, %v1043
        %vm1045 = vcmask 982912
        %v1046 = vsel %vm1045, %v1044, %v1039
        %v1047 = vadd.s32 %v944, 4294967176
        %v1048 = vlaneseq
        %v1049 = vshrl.u32 %v1048, 7
        %v1050 = vsub.s32 %v1047, %v1049
        %v1051 = vrot.slane %v798, %v1050
        %vm1052 = vcmask 1048512
        %v1053 = vsel %vm1052, %v1051, %v1046
        %v1054 = vlaneseq
        %v1055 = vshrl.u32 %v1054, 7
        %v1056 = vsub.s32 %v944, %v1055
        %v1057 = vrot.slane %v799, %v1056
        %v1058 = vlaneseq
        %v1059 = vshrl.u32 %v1058, 7
        %v1060 = vsub.s32 %v949, %v1059
        %v1061 = vrot.slane %v800, %v1060
        %v1062 = vsel %vm954, %v1061, %v1057
        %v1063 = vlaneseq
        %v1064 = vshrl.u32 %v1063, 7
        %v1065 = vsub.s32 %v956, %v1064
        %v1066 = vrot.slane %v801, %v1065
        %v1067 = vsel %vm961, %v1066, %v1062
        %v1068 = vlaneseq
        %v1069 = vshrl.u32 %v1068, 7
        %v1070 = vsub.s32 %v963, %v1069
        %v1071 = vrot.slane %v802, %v1070
        %v1072 = vsel %vm968, %v1071, %v1067
        %v1073 = vlaneseq
        %v1074 = vshrl.u32 %v1073, 7
        %v1075 = vsub.s32 %v970, %v1074
        %v1076 = vrot.slane %v803, %v1075
        %v1077 = vsel %vm975, %v1076, %v1072
        %v1078 = vlaneseq
        %v1079 = vshrl.u32 %v1078, 7
        %v1080 = vsub.s32 %v977, %v1079
        %v1081 = vrot.slane %v804, %v1080
        %v1082 = vsel %vm982, %v1081, %v1077
        %v1083 = vlaneseq
        %v1084 = vshrl.u32 %v1083, 7
        %v1085 = vsub.s32 %v984, %v1084
        %v1086 = vrot.slane %v805, %v1085
        %v1087 = vsel %vm989, %v1086, %v1082
        %v1088 = vlaneseq
        %v1089 = vshrl.u32 %v1088, 7
        %v1090 = vsub.s32 %v991, %v1089
        %v1091 = vrot.slane %v806, %v1090
        %v1092 = vsel %vm996, %v1091, %v1087
        %v1093 = vlaneseq
        %v1094 = vshrl.u32 %v1093, 7
        %v1095 = vsub.s32 %v998, %v1094
        %v1096 = vrot.slane %v807, %v1095
        %v1097 = vsel %vm1003, %v1096, %v1092
        %v1098 = vlaneseq
        %v1099 = vshrl.u32 %v1098, 7
        %v1100 = vsub.s32 %v1005, %v1099
        %v1101 = vrot.slane %v808, %v1100
        %v1102 = vsel %vm1010, %v1101, %v1097
        %v1103 = vlaneseq
        %v1104 = vshrl.u32 %v1103, 7
        %v1105 = vsub.s32 %v1012, %v1104
        %v1106 = vrot.slane %v809, %v1105
        %v1107 = vsel %vm1017, %v1106, %v1102
        %v1108 = vlaneseq
        %v1109 = vshrl.u32 %v1108, 7
        %v1110 = vsub.s32 %v1019, %v1109
        %v1111 = vrot.slane %v810, %v1110
        %v1112 = vsel %vm1024, %v1111, %v1107
        %v1113 = vlaneseq
        %v1114 = vshrl.u32 %v1113, 7
        %v1115 = vsub.s32 %v1026, %v1114
        %v1116 = vrot.slane %v811, %v1115
        %v1117 = vsel %vm1031, %v1116, %v1112
        %v1118 = vlaneseq
        %v1119 = vshrl.u32 %v1118, 7
        %v1120 = vsub.s32 %v1033, %v1119
        %v1121 = vrot.slane %v812, %v1120
        %v1122 = vsel %vm1038, %v1121, %v1117
        %v1123 = vlaneseq
        %v1124 = vshrl.u32 %v1123, 7
        %v1125 = vsub.s32 %v1040, %v1124
        %v1126 = vrot.slane %v813, %v1125
        %v1127 = vsel %vm1045, %v1126, %v1122
        %v1128 = vlaneseq
        %v1129 = vshrl.u32 %v1128, 7
        %v1130 = vsub.s32 %v1047, %v1129
        %v1131 = vrot.slane %v814, %v1130
        %v1132 = vsel %vm1052, %v1131, %v1127
        %v1133 = vlaneseq
        %v1134 = vshrl.u32 %v1133, 7
        %v1135 = vsub.s32 %v944, %v1134
        %v1136 = vrot.slane %v815, %v1135
        %v1137 = vlaneseq
        %v1138 = vshrl.u32 %v1137, 7
        %v1139 = vsub.s32 %v949, %v1138
        %v1140 = vrot.slane %v816, %v1139
        %v1141 = vsel %vm954, %v1140, %v1136
        %v1142 = vlaneseq
        %v1143 = vshrl.u32 %v1142, 7
        %v1144 = vsub.s32 %v956, %v1143
        %v1145 = vrot.slane %v817, %v1144
        %v1146 = vsel %vm961, %v1145, %v1141
        %v1147 = vlaneseq
        %v1148 = vshrl.u32 %v1147, 7
        %v1149 = vsub.s32 %v963, %v1148
        %v1150 = vrot.slane %v818, %v1149
        %v1151 = vsel %vm968, %v1150, %v1146
        %v1152 = vlaneseq
        %v1153 = vshrl.u32 %v1152, 7
        %v1154 = vsub.s32 %v970, %v1153
        %v1155 = vrot.slane %v819, %v1154
        %v1156 = vsel %vm975, %v1155, %v1151
        %v1157 = vlaneseq
        %v1158 = vshrl.u32 %v1157, 7
        %v1159 = vsub.s32 %v977, %v1158
        %v1160 = vrot.slane %v820, %v1159
        %v1161 = vsel %vm982, %v1160, %v1156
        %v1162 = vlaneseq
        %v1163 = vshrl.u32 %v1162, 7
        %v1164 = vsub.s32 %v984, %v1163
        %v1165 = vrot.slane %v821, %v1164
        %v1166 = vsel %vm989, %v1165, %v1161
        %v1167 = vlaneseq
        %v1168 = vshrl.u32 %v1167, 7
        %v1169 = vsub.s32 %v991, %v1168
        %v1170 = vrot.slane %v822, %v1169
        %v1171 = vsel %vm996, %v1170, %v1166
        %v1172 = vlaneseq
        %v1173 = vshrl.u32 %v1172, 7
        %v1174 = vsub.s32 %v998, %v1173
        %v1175 = vrot.slane %v823, %v1174
        %v1176 = vsel %vm1003, %v1175, %v1171
        %v1177 = vlaneseq
        %v1178 = vshrl.u32 %v1177, 7
        %v1179 = vsub.s32 %v1005, %v1178
        %v1180 = vrot.slane %v824, %v1179
        %v1181 = vsel %vm1010, %v1180, %v1176
        %v1182 = vlaneseq
        %v1183 = vshrl.u32 %v1182, 7
        %v1184 = vsub.s32 %v1012, %v1183
        %v1185 = vrot.slane %v825, %v1184
        %v1186 = vsel %vm1017, %v1185, %v1181
        %v1187 = vlaneseq
        %v1188 = vshrl.u32 %v1187, 7
        %v1189 = vsub.s32 %v1019, %v1188
        %v1190 = vrot.slane %v826, %v1189
        %v1191 = vsel %vm1024, %v1190, %v1186
        %v1192 = vlaneseq
        %v1193 = vshrl.u32 %v1192, 7
        %v1194 = vsub.s32 %v1026, %v1193
        %v1195 = vrot.slane %v827, %v1194
        %v1196 = vsel %vm1031, %v1195, %v1191
        %v1197 = vlaneseq
        %v1198 = vshrl.u32 %v1197, 7
        %v1199 = vsub.s32 %v1033, %v1198
        %v1200 = vrot.slane %v828, %v1199
        %v1201 = vsel %vm1038, %v1200, %v1196
        %v1202 = vlaneseq
        %v1203 = vshrl.u32 %v1202, 7
        %v1204 = vsub.s32 %v1040, %v1203
        %v1205 = vrot.slane %v829, %v1204
        %v1206 = vsel %vm1045, %v1205, %v1201
        %v1207 = vlaneseq
        %v1208 = vshrl.u32 %v1207, 7
        %v1209 = vsub.s32 %v1047, %v1208
        %v1210 = vrot.slane %v830, %v1209
        %v1211 = vsel %vm1052, %v1210, %v1206
        %v1212 = vlaneseq
        %v1213 = vshrl.u32 %v1212, 7
        %v1214 = vsub.s32 %v944, %v1213
        %v1215 = vrot.slane %v831, %v1214
        %v1216 = vlaneseq
        %v1217 = vshrl.u32 %v1216, 7
        %v1218 = vsub.s32 %v949, %v1217
        %v1219 = vrot.slane %v832, %v1218
        %v1220 = vsel %vm954, %v1219, %v1215
        %v1221 = vlaneseq
        %v1222 = vshrl.u32 %v1221, 7
        %v1223 = vsub.s32 %v956, %v1222
        %v1224 = vrot.slane %v833, %v1223
        %v1225 = vsel %vm961, %v1224, %v1220
        %v1226 = vlaneseq
        %v1227 = vshrl.u32 %v1226, 7
        %v1228 = vsub.s32 %v963, %v1227
        %v1229 = vrot.slane %v834, %v1228
        %v1230 = vsel %vm968, %v1229, %v1225
        %v1231 = vlaneseq
        %v1232 = vshrl.u32 %v1231, 7
        %v1233 = vsub.s32 %v970, %v1232
        %v1234 = vrot.slane %v835, %v1233
        %v1235 = vsel %vm975, %v1234, %v1230
        %v1236 = vlaneseq
        %v1237 = vshrl.u32 %v1236, 7
        %v1238 = vsub.s32 %v977, %v1237
        %v1239 = vrot.slane %v836, %v1238
        %v1240 = vsel %vm982, %v1239, %v1235
        %v1241 = vlaneseq
        %v1242 = vshrl.u32 %v1241, 7
        %v1243 = vsub.s32 %v984, %v1242
        %v1244 = vrot.slane %v837, %v1243
        %v1245 = vsel %vm989, %v1244, %v1240
        %v1246 = vlaneseq
        %v1247 = vshrl.u32 %v1246, 7
        %v1248 = vsub.s32 %v991, %v1247
        %v1249 = vrot.slane %v838, %v1248
        %v1250 = vsel %vm996, %v1249, %v1245
        %v1251 = vlaneseq
        %v1252 = vshrl.u32 %v1251, 7
        %v1253 = vsub.s32 %v998, %v1252
        %v1254 = vrot.slane %v839, %v1253
        %v1255 = vsel %vm1003, %v1254, %v1250
        %v1256 = vlaneseq
        %v1257 = vshrl.u32 %v1256, 7
        %v1258 = vsub.s32 %v1005, %v1257
        %v1259 = vrot.slane %v840, %v1258
        %v1260 = vsel %vm1010, %v1259, %v1255
        %v1261 = vlaneseq
        %v1262 = vshrl.u32 %v1261, 7
        %v1263 = vsub.s32 %v1012, %v1262
        %v1264 = vrot.slane %v841, %v1263
        %v1265 = vsel %vm1017, %v1264, %v1260
        %v1266 = vlaneseq
        %v1267 = vshrl.u32 %v1266, 7
        %v1268 = vsub.s32 %v1019, %v1267
        %v1269 = vrot.slane %v842, %v1268
        %v1270 = vsel %vm1024, %v1269, %v1265
        %v1271 = vlaneseq
        %v1272 = vshrl.u32 %v1271, 7
        %v1273 = vsub.s32 %v1026, %v1272
        %v1274 = vrot.slane %v843, %v1273
        %v1275 = vsel %vm1031, %v1274, %v1270
        %v1276 = vlaneseq
        %v1277 = vshrl.u32 %v1276, 7
        %v1278 = vsub.s32 %v1033, %v1277
        %v1279 = vrot.slane %v844, %v1278
        %v1280 = vsel %vm1038, %v1279, %v1275
        %v1281 = vlaneseq
        %v1282 = vshrl.u32 %v1281, 7
        %v1283 = vsub.s32 %v1040, %v1282
        %v1284 = vrot.slane %v845, %v1283
        %v1285 = vsel %vm1045, %v1284, %v1280
        %v1286 = vlaneseq
        %v1287 = vshrl.u32 %v1286, 7
        %v1288 = vsub.s32 %v1047, %v1287
        %v1289 = vrot.slane %v846, %v1288
        %v1290 = vsel %vm1052, %v1289, %v1285
        %vm1291 = vcmask 1041409
        %v1292 = vsel %vm1291, %v1211, %v1053
        %v1293 = vsel %vm1291, %v1290, %v1132
        %1296 = vmatprep.subr.mxu0 0.0
        %1297 = vmatpush1.msra.mxu0 %v847
        %1298 = vmatprep.subr.mxu0 0.0
        %1299 = vmatpush1.msra.mxu0 %v848
        %1300 = vmatprep.subr.mxu0 0.0
        %1301 = vmatpush1.msra.mxu0 %v849
        %1302 = vmatprep.subr.mxu0 0.0
        %1303 = vmatpush1.msra.mxu0 %v850
        %1304 = vmatprep.subr.mxu0 0.0
        %1305 = vmatpush1.msra.mxu0 %v851
        %1306 = vmatprep.subr.mxu0 0.0
        %1307 = vmatpush1.msra.mxu0 %v852
        %1308 = vmatprep.subr.mxu0 0.0
        %1309 = vmatpush1.msra.mxu0 %v853
        %1310 = vmatprep.subr.mxu0 0.0
        %1311 = vmatpush1.msra.mxu0 %v854
        %1312 = vmatprep.subr.mxu0 0.0
        %1313 = vmatpush1.msra.mxu0 %v855
        %1314 = vmatprep.subr.mxu0 0.0
        %1315 = vmatpush1.msra.mxu0 %v856
        %1316 = vmatprep.subr.mxu0 0.0
        %1317 = vmatpush1.msra.mxu0 %v857
        %1318 = vmatprep.subr.mxu0 0.0
        %1319 = vmatpush1.msra.mxu0 %v858
        %1320 = vmatprep.subr.mxu0 0.0
        %1321 = vmatpush1.msra.mxu0 %v859
        %1322 = vmatprep.subr.mxu0 0.0
        %1323 = vmatpush1.msra.mxu0 %v860
        %1324 = vmatprep.subr.mxu0 0.0
        %1325 = vmatpush1.msra.mxu0 %v861
        %1326 = vmatprep.subr.mxu0 0.0
        %1327 = vmatpush1.msra.mxu0 %v862
        %1328 = vmatprep.subr.mxu0 0.0
        %1329 = vmatpush1.msra.mxu0 %v863
        %1330 = vmatprep.subr.mxu0 0.0
        %1331 = vmatpush1.msra.mxu0 %v864
        %1332 = vmatprep.subr.mxu0 0.0
        %1333 = vmatpush1.msra.mxu0 %v865
        %1334 = vmatprep.subr.mxu0 0.0
        %1335 = vmatpush1.msra.mxu0 %v866
        %1336 = vmatprep.subr.mxu0 0.0
        %1337 = vmatpush1.msra.mxu0 %v867
        %1338 = vmatprep.subr.mxu0 0.0
        %1339 = vmatpush1.msra.mxu0 %v868
        %1340 = vmatprep.subr.mxu0 0.0
        %1341 = vmatpush1.msra.mxu0 %v869
        %1342 = vmatprep.subr.mxu0 0.0
        %1343 = vmatpush1.msra.mxu0 %v870
        %1344 = vmatprep.subr.mxu0 0.0
        %1345 = vmatpush1.msra.mxu0 %v871
        %1346 = vmatprep.subr.mxu0 0.0
        %1347 = vmatpush1.msra.mxu0 %v872
        %1348 = vmatprep.subr.mxu0 0.0
        %1349 = vmatpush1.msra.mxu0 %v873
        %1350 = vmatprep.subr.mxu0 0.0
        %1351 = vmatpush1.msra.mxu0 %v874
        %1352 = vmatprep.subr.mxu0 0.0
        %1353 = vmatpush1.msra.mxu0 %v875
        %1354 = vmatprep.subr.mxu0 0.0
        %1355 = vmatpush1.msra.mxu0 %v876
        %1356 = vmatprep.subr.mxu0 0.0
        %1357 = vmatpush1.msra.mxu0 %v877
        %1358 = vmatprep.subr.mxu0 0.0
        %1359 = vmatpush1.msra.mxu0 %v878
        %1360 = vmatprep.mubr.f32.mxu0 %v1293
        %1361 = vmatmul.mubr.f32.gmra.mrb[0].mxu0 %v1292
        %v1362 = vpop.f32.mrb[0].mxu0
        %v1363 = vadd.f32 0.0, %v1362
        %v1364 = vpop.f32.mrb[0].mxu0
        %1365 = vdwg.mxu0
        %v1366 = vmax.f32 %v1363, 0.0
        %v1367 = vld [vmem:[#allocation5] sm:$0xff]
        %v1368 = vld [vmem:[#allocation5 + $0x8] sm:$0xff]
        %v1369 = vld [vmem:[#allocation5 + $0x10] sm:$0xff]
        %v1370 = vld [vmem:[#allocation5 + $0x18] sm:$0xff]
        %v1371 = vld [vmem:[#allocation5 + $0x20] sm:$0xff]
        %v1372 = vld [vmem:[#allocation5 + $0x28] sm:$0xff]
        %v1373 = vld [vmem:[#allocation5 + $0x30] sm:$0xff]
        %v1374 = vld [vmem:[#allocation5 + $0x38] sm:$0xff]
        %vm1375 = vcmask 261120
        %v1377 = vsel %vm1375, %v1366, 0
        %1379 = vmatprep.subr.mxu0 %v1368
        %1380 = vmatpush1.msra.mxu0 %v1367
        %1381 = vmatprep.subr.mxu0 %v1370
        %1382 = vmatpush1.msra.mxu0 %v1369
        %1383 = vmatprep.subr.mxu0 %v1372
        %1384 = vmatpush1.msra.mxu0 %v1371
        %1385 = vmatprep.subr.mxu0 %v1374
        %1386 = vmatpush1.msra.mxu0 %v1373
        %1387 = vmatprep.subr.mxu0 0.0
        %1388 = vmatpush1.msra.mxu0 0.0
        %1389 = vmatprep.subr.mxu0 0.0
        %1390 = vmatpush1.msra.mxu0 0.0
        %1391 = vmatprep.subr.mxu0 0.0
        %1392 = vmatpush1.msra.mxu0 0.0
        %1393 = vmatprep.subr.mxu0 0.0
        %1394 = vmatpush1.msra.mxu0 0.0
        %1395 = vmatprep.subr.mxu0 0.0
        %1396 = vmatpush1.msra.mxu0 0.0
        %1397 = vmatprep.subr.mxu0 0.0
        %1398 = vmatpush1.msra.mxu0 0.0
        %1399 = vmatprep.subr.mxu0 0.0
        %1400 = vmatpush1.msra.mxu0 0.0
        %1401 = vmatprep.subr.mxu0 0.0
        %1402 = vmatpush1.msra.mxu0 0.0
        %1403 = vmatprep.subr.mxu0 0.0
        %1404 = vmatpush1.msra.mxu0 0.0
        %1405 = vmatprep.subr.mxu0 0.0
        %1406 = vmatpush1.msra.mxu0 0.0
        %1407 = vmatprep.subr.mxu0 0.0
        %1408 = vmatpush1.msra.mxu0 0.0
        %1409 = vmatprep.subr.mxu0 0.0
        %1410 = vmatpush1.msra.mxu0 0.0
        %1411 = vmatprep.subr.mxu0 0.0
        %1412 = vmatpush1.msra.mxu0 0.0
        %1413 = vmatprep.subr.mxu0 0.0
        %1414 = vmatpush1.msra.mxu0 0.0
        %1415 = vmatprep.subr.mxu0 0.0
        %1416 = vmatpush1.msra.mxu0 0.0
        %1417 = vmatprep.subr.mxu0 0.0
        %1418 = vmatpush1.msra.mxu0 0.0
        %1419 = vmatprep.subr.mxu0 0.0
        %1420 = vmatpush1.msra.mxu0 0.0
        %1421 = vmatprep.subr.mxu0 0.0
        %1422 = vmatpush1.msra.mxu0 0.0
        %1423 = vmatprep.subr.mxu0 0.0
        %1424 = vmatpush1.msra.mxu0 0.0
        %1425 = vmatprep.subr.mxu0 0.0
        %1426 = vmatpush1.msra.mxu0 0.0
        %1427 = vmatprep.subr.mxu0 0.0
        %1428 = vmatpush1.msra.mxu0 0.0
        %1429 = vmatprep.subr.mxu0 0.0
        %1430 = vmatpush1.msra.mxu0 0.0
        %1431 = vmatprep.subr.mxu0 0.0
        %1432 = vmatpush1.msra.mxu0 0.0
        %1433 = vmatprep.subr.mxu0 0.0
        %1434 = vmatpush1.msra.mxu0 0.0
        %1435 = vmatprep.subr.mxu0 0.0
        %1436 = vmatpush1.msra.mxu0 0.0
        %1437 = vmatprep.subr.mxu0 0.0
        %1438 = vmatpush1.msra.mxu0 0.0
        %1439 = vmatprep.subr.mxu0 0.0
        %1440 = vmatpush1.msra.mxu0 0.0
        %1441 = vmatprep.subr.mxu0 0.0
        %1442 = vmatpush1.msra.mxu0 0.0
        %1443 = vmatprep.mubr.f32.mxu0 0.0
        %1444 = vmatmul.mubr.f32.gmra.mrb[0].mxu0 %v1377
        %v1445 = vpop.f32.mrb[0].mxu0
        %v1446 = vadd.f32 0.0, %v1445
        %v1447 = vpop.f32.mrb[0].mxu0
        %v1448 = vadd.f32 0.0, %v1447
        %1449 = vdwg.mxu0
        %v1450 = vxor.u32 %v1446, 2147483648
        %v1451 = vxor.u32 %v1448, 2147483648
        %v1452 = vmul.f32 %v1450, 1.442695
        %v1453 = vpow.pop %v1452
        %v1454 = vmul.f32 %v1451, 1.442695
        %v1455 = vpow.pop %v1454
        %v1456 = vadd.f32 %v1453, 1.0
        %v1457 = vadd.f32 %v1455, 1.0
        %v1458 = vrcp.pop %v1456
        %v1459 = vmul.f32 1.0, %v1458
        %v1460 = vrcp.pop %v1457
        %v1461 = vmul.f32 1.0, %v1460
        %v1462 = vlaneseq
        %v1463 = vshrl.u32 %v1462, 7
        %v1464 = vsub.s32 0, %v1463
        %v1465 = vrot.slane %v1459, %v1464
        %1467 = vbcast.lane.b32.xlu0 %v1465, 256
        %v1468 = vpop.permute.xlu0 %1467
        %s1470 = sor.u32 256, 8
        %1471 = vbcast.lane.b32.xlu0 %v1465, %s1470
        %v1472 = vpop.permute.xlu0 %1471
        %s1474 = sor.u32 256, 16
        %1475 = vbcast.lane.b32.xlu0 %v1465, %s1474
        %v1476 = vpop.permute.xlu0 %1475
        %s1478 = sor.u32 256, 24
        %1479 = vbcast.lane.b32.xlu0 %v1465, %s1478
        %v1480 = vpop.permute.xlu0 %1479
        %s1482 = sor.u32 256, 32
        %1483 = vbcast.lane.b32.xlu0 %v1465, %s1482
        %v1484 = vpop.permute.xlu0 %1483
        %s1486 = sor.u32 256, 40
        %1487 = vbcast.lane.b32.xlu0 %v1465, %s1486
        %v1488 = vpop.permute.xlu0 %1487
        %s1490 = sor.u32 256, 48
        %1491 = vbcast.lane.b32.xlu0 %v1465, %s1490
        %v1492 = vpop.permute.xlu0 %1491
        %s1494 = sor.u32 256, 56
        %1495 = vbcast.lane.b32.xlu0 %v1465, %s1494
        %v1496 = vpop.permute.xlu0 %1495
        %s1498 = sor.u32 256, 64
        %1499 = vbcast.lane.b32.xlu0 %v1465, %s1498
        %v1500 = vpop.permute.xlu0 %1499
        %s1502 = sor.u32 256, 72
        %1503 = vbcast.lane.b32.xlu0 %v1465, %s1502
        %v1504 = vpop.permute.xlu0 %1503
        %s1506 = sor.u32 256, 80
        %1507 = vbcast.lane.b32.xlu0 %v1465, %s1506
        %v1508 = vpop.permute.xlu0 %1507
        %s1510 = sor.u32 256, 88
        %1511 = vbcast.lane.b32.xlu0 %v1465, %s1510
        %v1512 = vpop.permute.xlu0 %1511
        %s1514 = sor.u32 256, 96
        %1515 = vbcast.lane.b32.xlu0 %v1465, %s1514
        %v1516 = vpop.permute.xlu0 %1515
        %s1518 = sor.u32 256, 104
        %1519 = vbcast.lane.b32.xlu0 %v1465, %s1518
        %v1520 = vpop.permute.xlu0 %1519
        %s1522 = sor.u32 256, 112
        %1523 = vbcast.lane.b32.xlu0 %v1465, %s1522
        %v1524 = vpop.permute.xlu0 %1523
        %s1526 = sor.u32 256, 120
        %1527 = vbcast.lane.b32.xlu0 %v1465, %s1526
        %v1528 = vpop.permute.xlu0 %1527
        %v1529 = vlaneseq
        %v1530 = vshrl.u32 %v1529, 7
        %v1531 = vsub.s32 0, %v1530
        %v1532 = vrot.slane %v1461, %v1531
        %1534 = vbcast.lane.b32.xlu0 %v1532, 256
        %v1535 = vpop.permute.xlu0 %1534
        %s1537 = sor.u32 256, 8
        %1538 = vbcast.lane.b32.xlu0 %v1532, %s1537
        %v1539 = vpop.permute.xlu0 %1538
        %s1541 = sor.u32 256, 16
        %1542 = vbcast.lane.b32.xlu0 %v1532, %s1541
        %v1543 = vpop.permute.xlu0 %1542
        %s1545 = sor.u32 256, 24
        %1546 = vbcast.lane.b32.xlu0 %v1532, %s1545
        %v1547 = vpop.permute.xlu0 %1546
        %s1549 = sor.u32 256, 32
        %1550 = vbcast.lane.b32.xlu0 %v1532, %s1549
        %v1551 = vpop.permute.xlu0 %1550
        %s1553 = sor.u32 256, 40
        %1554 = vbcast.lane.b32.xlu0 %v1532, %s1553
        %v1555 = vpop.permute.xlu0 %1554
        %s1557 = sor.u32 256, 48
        %1558 = vbcast.lane.b32.xlu0 %v1532, %s1557
        %v1559 = vpop.permute.xlu0 %1558
        %s1561 = sor.u32 256, 56
        %1562 = vbcast.lane.b32.xlu0 %v1532, %s1561
        %v1563 = vpop.permute.xlu0 %1562
        %s1565 = sor.u32 256, 64
        %1566 = vbcast.lane.b32.xlu0 %v1532, %s1565
        %v1567 = vpop.permute.xlu0 %1566
        %s1569 = sor.u32 256, 72
        %1570 = vbcast.lane.b32.xlu0 %v1532, %s1569
        %v1571 = vpop.permute.xlu0 %1570
        %s1573 = sor.u32 256, 80
        %1574 = vbcast.lane.b32.xlu0 %v1532, %s1573
        %v1575 = vpop.permute.xlu0 %1574
        %s1577 = sor.u32 256, 88
        %1578 = vbcast.lane.b32.xlu0 %v1532, %s1577
        %v1579 = vpop.permute.xlu0 %1578
        %s1581 = sor.u32 256, 96
        %1582 = vbcast.lane.b32.xlu0 %v1532, %s1581
        %v1583 = vpop.permute.xlu0 %1582
        %s1585 = sor.u32 256, 104
        %1586 = vbcast.lane.b32.xlu0 %v1532, %s1585
        %v1587 = vpop.permute.xlu0 %1586
        %s1589 = sor.u32 256, 112
        %1590 = vbcast.lane.b32.xlu0 %v1532, %s1589
        %v1591 = vpop.permute.xlu0 %1590
        %s1593 = sor.u32 256, 120
        %1594 = vbcast.lane.b32.xlu0 %v1532, %s1593
        %v1595 = vpop.permute.xlu0 %1594
        %v1596 = vlaneseq
        %v1597 = vshrl.u32 %v1596, 7
        %v1598 = vsub.s32 1, %v1597
        %v1599 = vrot.slane %v1459, %v1598
        %1601 = vbcast.lane.b32.xlu0 %v1599, 256
        %v1602 = vpop.permute.xlu0 %1601
        %s1604 = sor.u32 256, 8
        %1605 = vbcast.lane.b32.xlu0 %v1599, %s1604
        %v1606 = vpop.permute.xlu0 %1605
        %s1608 = sor.u32 256, 16
        %1609 = vbcast.lane.b32.xlu0 %v1599, %s1608
        %v1610 = vpop.permute.xlu0 %1609
        %s1612 = sor.u32 256, 24
        %1613 = vbcast.lane.b32.xlu0 %v1599, %s1612
        %v1614 = vpop.permute.xlu0 %1613
        %s1616 = sor.u32 256, 32
        %1617 = vbcast.lane.b32.xlu0 %v1599, %s1616
        %v1618 = vpop.permute.xlu0 %1617
        %s1620 = sor.u32 256, 40
        %1621 = vbcast.lane.b32.xlu0 %v1599, %s1620
        %v1622 = vpop.permute.xlu0 %1621
        %s1624 = sor.u32 256, 48
        %1625 = vbcast.lane.b32.xlu0 %v1599, %s1624
        %v1626 = vpop.permute.xlu0 %1625
        %s1628 = sor.u32 256, 56
        %1629 = vbcast.lane.b32.xlu0 %v1599, %s1628
        %v1630 = vpop.permute.xlu0 %1629
        %s1632 = sor.u32 256, 64
        %1633 = vbcast.lane.b32.xlu0 %v1599, %s1632
        %v1634 = vpop.permute.xlu0 %1633
        %s1636 = sor.u32 256, 72
        %1637 = vbcast.lane.b32.xlu0 %v1599, %s1636
        %v1638 = vpop.permute.xlu0 %1637
        %s1640 = sor.u32 256, 80
        %1641 = vbcast.lane.b32.xlu0 %v1599, %s1640
        %v1642 = vpop.permute.xlu0 %1641
        %s1644 = sor.u32 256, 88
        %1645 = vbcast.lane.b32.xlu0 %v1599, %s1644
        %v1646 = vpop.permute.xlu0 %1645
        %s1648 = sor.u32 256, 96
        %1649 = vbcast.lane.b32.xlu0 %v1599, %s1648
        %v1650 = vpop.permute.xlu0 %1649
        %s1652 = sor.u32 256, 104
        %1653 = vbcast.lane.b32.xlu0 %v1599, %s1652
        %v1654 = vpop.permute.xlu0 %1653
        %s1656 = sor.u32 256, 112
        %1657 = vbcast.lane.b32.xlu0 %v1599, %s1656
        %v1658 = vpop.permute.xlu0 %1657
        %s1660 = sor.u32 256, 120
        %1661 = vbcast.lane.b32.xlu0 %v1599, %s1660
        %v1662 = vpop.permute.xlu0 %1661
        %v1663 = vlaneseq
        %v1664 = vshrl.u32 %v1663, 7
        %v1665 = vsub.s32 1, %v1664
        %v1666 = vrot.slane %v1461, %v1665
        %1668 = vbcast.lane.b32.xlu0 %v1666, 256
        %v1669 = vpop.permute.xlu0 %1668
        %s1671 = sor.u32 256, 8
        %1672 = vbcast.lane.b32.xlu0 %v1666, %s1671
        %v1673 = vpop.permute.xlu0 %1672
        %s1675 = sor.u32 256, 16
        %1676 = vbcast.lane.b32.xlu0 %v1666, %s1675
        %v1677 = vpop.permute.xlu0 %1676
        %s1679 = sor.u32 256, 24
        %1680 = vbcast.lane.b32.xlu0 %v1666, %s1679
        %v1681 = vpop.permute.xlu0 %1680
        %s1683 = sor.u32 256, 32
        %1684 = vbcast.lane.b32.xlu0 %v1666, %s1683
        %v1685 = vpop.permute.xlu0 %1684
        %s1687 = sor.u32 256, 40
        %1688 = vbcast.lane.b32.xlu0 %v1666, %s1687
        %v1689 = vpop.permute.xlu0 %1688
        %s1691 = sor.u32 256, 48
        %1692 = vbcast.lane.b32.xlu0 %v1666, %s1691
        %v1693 = vpop.permute.xlu0 %1692
        %s1695 = sor.u32 256, 56
        %1696 = vbcast.lane.b32.xlu0 %v1666, %s1695
        %v1697 = vpop.permute.xlu0 %1696
        %s1699 = sor.u32 256, 64
        %1700 = vbcast.lane.b32.xlu0 %v1666, %s1699
        %v1701 = vpop.permute.xlu0 %1700
        %s1703 = sor.u32 256, 72
        %1704 = vbcast.lane.b32.xlu0 %v1666, %s1703
        %v1705 = vpop.permute.xlu0 %1704
        %s1707 = sor.u32 256, 80
        %1708 = vbcast.lane.b32.xlu0 %v1666, %s1707
        %v1709 = vpop.permute.xlu0 %1708
        %s1711 = sor.u32 256, 88
        %1712 = vbcast.lane.b32.xlu0 %v1666, %s1711
        %v1713 = vpop.permute.xlu0 %1712
        %s1715 = sor.u32 256, 96
        %1716 = vbcast.lane.b32.xlu0 %v1666, %s1715
        %v1717 = vpop.permute.xlu0 %1716
        %s1719 = sor.u32 256, 104
        %1720 = vbcast.lane.b32.xlu0 %v1666, %s1719
        %v1721 = vpop.permute.xlu0 %1720
        %s1723 = sor.u32 256, 112
        %1724 = vbcast.lane.b32.xlu0 %v1666, %s1723
        %v1725 = vpop.permute.xlu0 %1724
        %s1727 = sor.u32 256, 120
        %1728 = vbcast.lane.b32.xlu0 %v1666, %s1727
        %v1729 = vpop.permute.xlu0 %1728
        %v1730 = vmul.f32 %v207, %v1468
        %v1731 = vmul.f32 %v208, %v1468
        %v1732 = vmul.f32 %v209, %v1468
        %v1733 = vmul.f32 %v210, %v1468
        %v1734 = vmul.f32 %v211, %v1472
        %v1735 = vmul.f32 %v212, %v1472
        %v1736 = vmul.f32 %v213, %v1472
        %v1737 = vmul.f32 %v214, %v1472
        %v1738 = vmul.f32 %v215, %v1476
        %v1739 = vmul.f32 %v216, %v1476
        %v1740 = vmul.f32 %v217, %v1476
        %v1741 = vmul.f32 %v218, %v1476
        %v1742 = vmul.f32 %v219, %v1480
        %v1743 = vmul.f32 %v220, %v1480
        %v1744 = vmul.f32 %v221, %v1480
        %v1745 = vmul.f32 %v222, %v1480
        %v1746 = vmul.f32 %v223, %v1484
        %v1747 = vmul.f32 %v224, %v1484
        %v1748 = vmul.f32 %v225, %v1484
        %v1749 = vmul.f32 %v226, %v1484
        %v1750 = vmul.f32 %v227, %v1488
        %v1751 = vmul.f32 %v228, %v1488
        %v1752 = vmul.f32 %v229, %v1488
        %v1753 = vmul.f32 %v230, %v1488
        %v1754 = vmul.f32 %v231, %v1492
        %v1755 = vmul.f32 %v232, %v1492
        %v1756 = vmul.f32 %v233, %v1492
        %v1757 = vmul.f32 %v234, %v1492
        %v1758 = vmul.f32 %v235, %v1496
        %v1759 = vmul.f32 %v236, %v1496
        %v1760 = vmul.f32 %v237, %v1496
        %v1761 = vmul.f32 %v238, %v1496
        %v1762 = vmul.f32 %v239, %v1500
        %v1763 = vmul.f32 %v240, %v1500
        %v1764 = vmul.f32 %v241, %v1500
        %v1765 = vmul.f32 %v242, %v1500
        %v1766 = vmul.f32 %v243, %v1504
        %v1767 = vmul.f32 %v244, %v1504
        %v1768 = vmul.f32 %v245, %v1504
        %v1769 = vmul.f32 %v246, %v1504
        %v1770 = vmul.f32 %v247, %v1508
        %v1771 = vmul.f32 %v248, %v1508
        %v1772 = vmul.f32 %v249, %v1508
        %v1773 = vmul.f32 %v250, %v1508
        %v1774 = vmul.f32 %v251, %v1512
        %v1775 = vmul.f32 %v252, %v1512
        %v1776 = vmul.f32 %v253, %v1512
        %v1777 = vmul.f32 %v254, %v1512
        %v1778 = vmul.f32 %v255, %v1516
        %v1779 = vmul.f32 %v256, %v1516
        %v1780 = vmul.f32 %v257, %v1516
        %v1781 = vmul.f32 %v258, %v1516
        %v1782 = vmul.f32 %v259, %v1520
        %v1783 = vmul.f32 %v260, %v1520
        %v1784 = vmul.f32 %v261, %v1520
        %v1785 = vmul.f32 %v262, %v1520
        %v1786 = vmul.f32 %v263, %v1524
        %v1787 = vmul.f32 %v264, %v1524
        %v1788 = vmul.f32 %v265, %v1524
        %v1789 = vmul.f32 %v266, %v1524
        %v1790 = vmul.f32 %v267, %v1528
        %v1791 = vmul.f32 %v268, %v1528
        %v1792 = vmul.f32 %v269, %v1528
        %v1793 = vmul.f32 %v270, %v1528
        %v1794 = vmul.f32 %v271, %v1535
        %v1795 = vmul.f32 %v272, %v1535
        %v1796 = vmul.f32 %v273, %v1535
        %v1797 = vmul.f32 %v274, %v1535
        %v1798 = vmul.f32 %v275, %v1539
        %v1799 = vmul.f32 %v276, %v1539
        %v1800 = vmul.f32 %v277, %v1539
        %v1801 = vmul.f32 %v278, %v1539
        %v1802 = vmul.f32 %v279, %v1543
        %v1803 = vmul.f32 %v280, %v1543
        %v1804 = vmul.f32 %v281, %v1543
        %v1805 = vmul.f32 %v282, %v1543
        %v1806 = vmul.f32 %v283, %v1547
        %v1807 = vmul.f32 %v284, %v1547
        %v1808 = vmul.f32 %v285, %v1547
        %v1809 = vmul.f32 %v286, %v1547
        %v1810 = vmul.f32 %v287, %v1551
        %v1811 = vmul.f32 %v288, %v1551
        %v1812 = vmul.f32 %v289, %v1551
        %v1813 = vmul.f32 %v290, %v1551
        %v1814 = vmul.f32 %v291, %v1555
        %v1815 = vmul.f32 %v292, %v1555
        %v1816 = vmul.f32 %v293, %v1555
        %v1817 = vmul.f32 %v294, %v1555
        %v1818 = vmul.f32 %v295, %v1559
        %v1819 = vmul.f32 %v296, %v1559
        %v1820 = vmul.f32 %v297, %v1559
        %v1821 = vmul.f32 %v298, %v1559
        %v1822 = vmul.f32 %v299, %v1563
        %v1823 = vmul.f32 %v300, %v1563
        %v1824 = vmul.f32 %v301, %v1563
        %v1825 = vmul.f32 %v302, %v1563
        %v1826 = vmul.f32 %v303, %v1567
        %v1827 = vmul.f32 %v304, %v1567
        %v1828 = vmul.f32 %v305, %v1567
        %v1829 = vmul.f32 %v306, %v1567
        %v1830 = vmul.f32 %v307, %v1571
        %v1831 = vmul.f32 %v308, %v1571
        %v1832 = vmul.f32 %v309, %v1571
        %v1833 = vmul.f32 %v310, %v1571
        %v1834 = vmul.f32 %v311, %v1575
        %v1835 = vmul.f32 %v312, %v1575
        %v1836 = vmul.f32 %v313, %v1575
        %v1837 = vmul.f32 %v314, %v1575
        %v1838 = vmul.f32 %v315, %v1579
        %v1839 = vmul.f32 %v316, %v1579
        %v1840 = vmul.f32 %v317, %v1579
        %v1841 = vmul.f32 %v318, %v1579
        %v1842 = vmul.f32 %v319, %v1583
        %v1843 = vmul.f32 %v320, %v1583
        %v1844 = vmul.f32 %v321, %v1583
        %v1845 = vmul.f32 %v322, %v1583
        %v1846 = vmul.f32 %v323, %v1587
        %v1847 = vmul.f32 %v324, %v1587
        %v1848 = vmul.f32 %v325, %v1587
        %v1849 = vmul.f32 %v326, %v1587
        %v1850 = vmul.f32 %v327, %v1591
        %v1851 = vmul.f32 %v328, %v1591
        %v1852 = vmul.f32 %v329, %v1591
        %v1853 = vmul.f32 %v330, %v1591
        %v1854 = vmul.f32 %v331, %v1595
        %v1855 = vmul.f32 %v332, %v1595
        %v1856 = vmul.f32 %v333, %v1595
        %v1857 = vmul.f32 %v334, %v1595
        %v1858 = vmul.f32 %v335, %v1602
        %v1859 = vmul.f32 %v336, %v1602
        %v1860 = vmul.f32 %v337, %v1602
        %v1861 = vmul.f32 %v338, %v1602
        %v1862 = vmul.f32 %v339, %v1606
        %v1863 = vmul.f32 %v340, %v1606
        %v1864 = vmul.f32 %v341, %v1606
        %v1865 = vmul.f32 %v342, %v1606
        %v1866 = vmul.f32 %v343, %v1610
        %v1867 = vmul.f32 %v344, %v1610
        %v1868 = vmul.f32 %v345, %v1610
        %v1869 = vmul.f32 %v346, %v1610
        %v1870 = vmul.f32 %v347, %v1614
        %v1871 = vmul.f32 %v348, %v1614
        %v1872 = vmul.f32 %v349, %v1614
        %v1873 = vmul.f32 %v350, %v1614
        %v1874 = vmul.f32 %v351, %v1618
        %v1875 = vmul.f32 %v352, %v1618
        %v1876 = vmul.f32 %v353, %v1618
        %v1877 = vmul.f32 %v354, %v1618
        %v1878 = vmul.f32 %v355, %v1622
        %v1879 = vmul.f32 %v356, %v1622
        %v1880 = vmul.f32 %v357, %v1622
        %v1881 = vmul.f32 %v358, %v1622
        %v1882 = vmul.f32 %v359, %v1626
        %v1883 = vmul.f32 %v360, %v1626
        %v1884 = vmul.f32 %v361, %v1626
        %v1885 = vmul.f32 %v362, %v1626
        %v1886 = vmul.f32 %v363, %v1630
        %v1887 = vmul.f32 %v364, %v1630
        %v1888 = vmul.f32 %v365, %v1630
        %v1889 = vmul.f32 %v366, %v1630
        %v1890 = vmul.f32 %v367, %v1634
        %v1891 = vmul.f32 %v368, %v1634
        %v1892 = vmul.f32 %v369, %v1634
        %v1893 = vmul.f32 %v370, %v1634
        %v1894 = vmul.f32 %v371, %v1638
        %v1895 = vmul.f32 %v372, %v1638
        %v1896 = vmul.f32 %v373, %v1638
        %v1897 = vmul.f32 %v374, %v1638
        %v1898 = vmul.f32 %v375, %v1642
        %v1899 = vmul.f32 %v376, %v1642
        %v1900 = vmul.f32 %v377, %v1642
        %v1901 = vmul.f32 %v378, %v1642
        %v1902 = vmul.f32 %v379, %v1646
        %v1903 = vmul.f32 %v380, %v1646
        %v1904 = vmul.f32 %v381, %v1646
        %v1905 = vmul.f32 %v382, %v1646
        %v1906 = vmul.f32 %v383, %v1650
        %v1907 = vmul.f32 %v384, %v1650
        %v1908 = vmul.f32 %v385, %v1650
        %v1909 = vmul.f32 %v386, %v1650
        %v1910 = vmul.f32 %v387, %v1654
        %v1911 = vmul.f32 %v388, %v1654
        %v1912 = vmul.f32 %v389, %v1654
        %v1913 = vmul.f32 %v390, %v1654
        %v1914 = vmul.f32 %v391, %v1658
        %v1915 = vmul.f32 %v392, %v1658
        %v1916 = vmul.f32 %v393, %v1658
        %v1917 = vmul.f32 %v394, %v1658
        %v1918 = vmul.f32 %v395, %v1662
        %v1919 = vmul.f32 %v396, %v1662
        %v1920 = vmul.f32 %v397, %v1662
        %v1921 = vmul.f32 %v398, %v1662
        %v1922 = vmul.f32 %v399, %v1669
        %v1923 = vmul.f32 %v400, %v1669
        %v1924 = vmul.f32 %v401, %v1669
        %v1925 = vmul.f32 %v402, %v1669
        %v1926 = vmul.f32 %v403, %v1673
        %v1927 = vmul.f32 %v404, %v1673
        %v1928 = vmul.f32 %v405, %v1673
        %v1929 = vmul.f32 %v406, %v1673
        %v1930 = vmul.f32 %v407, %v1677
        %v1931 = vmul.f32 %v408, %v1677
        %v1932 = vmul.f32 %v409, %v1677
        %v1933 = vmul.f32 %v410, %v1677
        %v1934 = vmul.f32 %v411, %v1681
        %v1935 = vmul.f32 %v412, %v1681
        %v1936 = vmul.f32 %v413, %v1681
        %v1937 = vmul.f32 %v414, %v1681
        %v1938 = vmul.f32 %v415, %v1685
        %v1939 = vmul.f32 %v416, %v1685
        %v1940 = vmul.f32 %v417, %v1685
        %v1941 = vmul.f32 %v418, %v1685
        %v1942 = vmul.f32 %v419, %v1689
        %v1943 = vmul.f32 %v420, %v1689
        %v1944 = vmul.f32 %v421, %v1689
        %v1945 = vmul.f32 %v422, %v1689
        %v1946 = vmul.f32 %v423, %v1693
        %v1947 = vmul.f32 %v424, %v1693
        %v1948 = vmul.f32 %v425, %v1693
        %v1949 = vmul.f32 %v426, %v1693
        %v1950 = vmul.f32 %v427, %v1697
        %v1951 = vmul.f32 %v428, %v1697
        %v1952 = vmul.f32 %v429, %v1697
        %v1953 = vmul.f32 %v430, %v1697
        %v1954 = vmul.f32 %v431, %v1701
        %v1955 = vmul.f32 %v432, %v1701
        %v1956 = vmul.f32 %v433, %v1701
        %v1957 = vmul.f32 %v434, %v1701
        %v1958 = vmul.f32 %v435, %v1705
        %v1959 = vmul.f32 %v436, %v1705
        %v1960 = vmul.f32 %v437, %v1705
        %v1961 = vmul.f32 %v438, %v1705
        %v1962 = vmul.f32 %v439, %v1709
        %v1963 = vmul.f32 %v440, %v1709
        %v1964 = vmul.f32 %v441, %v1709
        %v1965 = vmul.f32 %v442, %v1709
        %v1966 = vmul.f32 %v443, %v1713
        %v1967 = vmul.f32 %v444, %v1713
        %v1968 = vmul.f32 %v445, %v1713
        %v1969 = vmul.f32 %v446, %v1713
        %v1970 = vmul.f32 %v447, %v1717
        %v1971 = vmul.f32 %v448, %v1717
        %v1972 = vmul.f32 %v449, %v1717
        %v1973 = vmul.f32 %v450, %v1717
        %v1974 = vmul.f32 %v451, %v1721
        %v1975 = vmul.f32 %v452, %v1721
        %v1976 = vmul.f32 %v453, %v1721
        %v1977 = vmul.f32 %v454, %v1721
        %v1978 = vmul.f32 %v455, %v1725
        %v1979 = vmul.f32 %v456, %v1725
        %v1980 = vmul.f32 %v457, %v1725
        %v1981 = vmul.f32 %v458, %v1725
        %v1982 = vmul.f32 %v459, %v1729
        %v1983 = vmul.f32 %v460, %v1729
        %v1984 = vmul.f32 %v461, %v1729
        %v1985 = vmul.f32 %v462, %v1729
        %1986 = vst [vmem:[%s204] sm:$0xff] %v1730
        %1987 = vst [vmem:[%s204 + $0x8] sm:$0xff] %v1731
        %1988 = vst [vmem:[%s204 + $0x10] sm:$0xff] %v1732
        %1989 = vst [vmem:[%s204 + $0x18] sm:$0xff] %v1733
        %1990 = vst [vmem:[%s204 + $0x20] sm:$0xff] %v1734
        %1991 = vst [vmem:[%s204 + $0x28] sm:$0xff] %v1735
        %1992 = vst [vmem:[%s204 + $0x30] sm:$0xff] %v1736
        %1993 = vst [vmem:[%s204 + $0x38] sm:$0xff] %v1737
        %1994 = vst [vmem:[%s204 + $0x40] sm:$0xff] %v1738
        %1995 = vst [vmem:[%s204 + $0x48] sm:$0xff] %v1739
        %1996 = vst [vmem:[%s204 + $0x50] sm:$0xff] %v1740
        %1997 = vst [vmem:[%s204 + $0x58] sm:$0xff] %v1741
        %1998 = vst [vmem:[%s204 + $0x60] sm:$0xff] %v1742
        %1999 = vst [vmem:[%s204 + $0x68] sm:$0xff] %v1743
        %2000 = vst [vmem:[%s204 + $0x70] sm:$0xff] %v1744
        %2001 = vst [vmem:[%s204 + $0x78] sm:$0xff] %v1745
        %2002 = vst [vmem:[%s204 + $0x80] sm:$0xff] %v1746
        %2003 = vst [vmem:[%s204 + $0x88] sm:$0xff] %v1747
        %2004 = vst [vmem:[%s204 + $0x90] sm:$0xff] %v1748
        %2005 = vst [vmem:[%s204 + $0x98] sm:$0xff] %v1749
        %2006 = vst [vmem:[%s204 + $0xa0] sm:$0xff] %v1750
        %2007 = vst [vmem:[%s204 + $0xa8] sm:$0xff] %v1751
        %2008 = vst [vmem:[%s204 + $0xb0] sm:$0xff] %v1752
        %2009 = vst [vmem:[%s204 + $0xb8] sm:$0xff] %v1753
        %2010 = vst [vmem:[%s204 + $0xc0] sm:$0xff] %v1754
        %2011 = vst [vmem:[%s204 + $0xc8] sm:$0xff] %v1755
        %2012 = vst [vmem:[%s204 + $0xd0] sm:$0xff] %v1756
        %2013 = vst [vmem:[%s204 + $0xd8] sm:$0xff] %v1757
        %2014 = vst [vmem:[%s204 + $0xe0] sm:$0xff] %v1758
        %2015 = vst [vmem:[%s204 + $0xe8] sm:$0xff] %v1759
        %2016 = vst [vmem:[%s204 + $0xf0] sm:$0xff] %v1760
        %2017 = vst [vmem:[%s204 + $0xf8] sm:$0xff] %v1761
        %2018 = vst [vmem:[%s204 + $0x100] sm:$0xff] %v1762
        %2019 = vst [vmem:[%s204 + $0x108] sm:$0xff] %v1763
        %2020 = vst [vmem:[%s204 + $0x110] sm:$0xff] %v1764
        %2021 = vst [vmem:[%s204 + $0x118] sm:$0xff] %v1765
        %2022 = vst [vmem:[%s204 + $0x120] sm:$0xff] %v1766
        %2023 = vst [vmem:[%s204 + $0x128] sm:$0xff] %v1767
        %2024 = vst [vmem:[%s204 + $0x130] sm:$0xff] %v1768
        %2025 = vst [vmem:[%s204 + $0x138] sm:$0xff] %v1769
        %2026 = vst [vmem:[%s204 + $0x140] sm:$0xff] %v1770
        %2027 = vst [vmem:[%s204 + $0x148] sm:$0xff] %v1771
        %2028 = vst [vmem:[%s204 + $0x150] sm:$0xff] %v1772
        %2029 = vst [vmem:[%s204 + $0x158] sm:$0xff] %v1773
        %2030 = vst [vmem:[%s204 + $0x160] sm:$0xff] %v1774
        %2031 = vst [vmem:[%s204 + $0x168] sm:$0xff] %v1775
        %2032 = vst [vmem:[%s204 + $0x170] sm:$0xff] %v1776
        %2033 = vst [vmem:[%s204 + $0x178] sm:$0xff] %v1777
        %2034 = vst [vmem:[%s204 + $0x180] sm:$0xff] %v1778
        %2035 = vst [vmem:[%s204 + $0x188] sm:$0xff] %v1779
        %2036 = vst [vmem:[%s204 + $0x190] sm:$0xff] %v1780
        %2037 = vst [vmem:[%s204 + $0x198] sm:$0xff] %v1781
        %2038 = vst [vmem:[%s204 + $0x1a0] sm:$0xff] %v1782
        %2039 = vst [vmem:[%s204 + $0x1a8] sm:$0xff] %v1783
        %2040 = vst [vmem:[%s204 + $0x1b0] sm:$0xff] %v1784
        %2041 = vst [vmem:[%s204 + $0x1b8] sm:$0xff] %v1785
        %2042 = vst [vmem:[%s204 + $0x1c0] sm:$0xff] %v1786
        %2043 = vst [vmem:[%s204 + $0x1c8] sm:$0xff] %v1787
        %2044 = vst [vmem:[%s204 + $0x1d0] sm:$0xff] %v1788
        %2045 = vst [vmem:[%s204 + $0x1d8] sm:$0xff] %v1789
        %2046 = vst [vmem:[%s204 + $0x1e0] sm:$0xff] %v1790
        %2047 = vst [vmem:[%s204 + $0x1e8] sm:$0xff] %v1791
        %2048 = vst [vmem:[%s204 + $0x1f0] sm:$0xff] %v1792
        %2049 = vst [vmem:[%s204 + $0x1f8] sm:$0xff] %v1793
        %2050 = vst [vmem:[%s204 + $0x200] sm:$0xff] %v1794
        %2051 = vst [vmem:[%s204 + $0x208] sm:$0xff] %v1795
        %2052 = vst [vmem:[%s204 + $0x210] sm:$0xff] %v1796
        %2053 = vst [vmem:[%s204 + $0x218] sm:$0xff] %v1797
        %2054 = vst [vmem:[%s204 + $0x220] sm:$0xff] %v1798
        %2055 = vst [vmem:[%s204 + $0x228] sm:$0xff] %v1799
        %2056 = vst [vmem:[%s204 + $0x230] sm:$0xff] %v1800
        %2057 = vst [vmem:[%s204 + $0x238] sm:$0xff] %v1801
        %2058 = vst [vmem:[%s204 + $0x240] sm:$0xff] %v1802
        %2059 = vst [vmem:[%s204 + $0x248] sm:$0xff] %v1803
        %2060 = vst [vmem:[%s204 + $0x250] sm:$0xff] %v1804
        %2061 = vst [vmem:[%s204 + $0x258] sm:$0xff] %v1805
        %2062 = vst [vmem:[%s204 + $0x260] sm:$0xff] %v1806
        %2063 = vst [vmem:[%s204 + $0x268] sm:$0xff] %v1807
        %2064 = vst [vmem:[%s204 + $0x270] sm:$0xff] %v1808
        %2065 = vst [vmem:[%s204 + $0x278] sm:$0xff] %v1809
        %2066 = vst [vmem:[%s204 + $0x280] sm:$0xff] %v1810
        %2067 = vst [vmem:[%s204 + $0x288] sm:$0xff] %v1811
        %2068 = vst [vmem:[%s204 + $0x290] sm:$0xff] %v1812
        %2069 = vst [vmem:[%s204 + $0x298] sm:$0xff] %v1813
        %2070 = vst [vmem:[%s204 + $0x2a0] sm:$0xff] %v1814
        %2071 = vst [vmem:[%s204 + $0x2a8] sm:$0xff] %v1815
        %2072 = vst [vmem:[%s204 + $0x2b0] sm:$0xff] %v1816
        %2073 = vst [vmem:[%s204 + $0x2b8] sm:$0xff] %v1817
        %2074 = vst [vmem:[%s204 + $0x2c0] sm:$0xff] %v1818
        %2075 = vst [vmem:[%s204 + $0x2c8] sm:$0xff] %v1819
        %2076 = vst [vmem:[%s204 + $0x2d0] sm:$0xff] %v1820
        %2077 = vst [vmem:[%s204 + $0x2d8] sm:$0xff] %v1821
        %2078 = vst [vmem:[%s204 + $0x2e0] sm:$0xff] %v1822
        %2079 = vst [vmem:[%s204 + $0x2e8] sm:$0xff] %v1823
        %2080 = vst [vmem:[%s204 + $0x2f0] sm:$0xff] %v1824
        %2081 = vst [vmem:[%s204 + $0x2f8] sm:$0xff] %v1825
        %2082 = vst [vmem:[%s204 + $0x300] sm:$0xff] %v1826
        %2083 = vst [vmem:[%s204 + $0x308] sm:$0xff] %v1827
        %2084 = vst [vmem:[%s204 + $0x310] sm:$0xff] %v1828
        %2085 = vst [vmem:[%s204 + $0x318] sm:$0xff] %v1829
        %2086 = vst [vmem:[%s204 + $0x320] sm:$0xff] %v1830
        %2087 = vst [vmem:[%s204 + $0x328] sm:$0xff] %v1831
        %2088 = vst [vmem:[%s204 + $0x330] sm:$0xff] %v1832
        %2089 = vst [vmem:[%s204 + $0x338] sm:$0xff] %v1833
        %2090 = vst [vmem:[%s204 + $0x340] sm:$0xff] %v1834
        %2091 = vst [vmem:[%s204 + $0x348] sm:$0xff] %v1835
        %2092 = vst [vmem:[%s204 + $0x350] sm:$0xff] %v1836
        %2093 = vst [vmem:[%s204 + $0x358] sm:$0xff] %v1837
        %2094 = vst [vmem:[%s204 + $0x360] sm:$0xff] %v1838
        %2095 = vst [vmem:[%s204 + $0x368] sm:$0xff] %v1839
        %2096 = vst [vmem:[%s204 + $0x370] sm:$0xff] %v1840
        %2097 = vst [vmem:[%s204 + $0x378] sm:$0xff] %v1841
        %2098 = vst [vmem:[%s204 + $0x380] sm:$0xff] %v1842
        %2099 = vst [vmem:[%s204 + $0x388] sm:$0xff] %v1843
        %2100 = vst [vmem:[%s204 + $0x390] sm:$0xff] %v1844
        %2101 = vst [vmem:[%s204 + $0x398] sm:$0xff] %v1845
        %2102 = vst [vmem:[%s204 + $0x3a0] sm:$0xff] %v1846
        %2103 = vst [vmem:[%s204 + $0x3a8] sm:$0xff] %v1847
        %2104 = vst [vmem:[%s204 + $0x3b0] sm:$0xff] %v1848
        %2105 = vst [vmem:[%s204 + $0x3b8] sm:$0xff] %v1849
        %2106 = vst [vmem:[%s204 + $0x3c0] sm:$0xff] %v1850
        %2107 = vst [vmem:[%s204 + $0x3c8] sm:$0xff] %v1851
        %2108 = vst [vmem:[%s204 + $0x3d0] sm:$0xff] %v1852
        %2109 = vst [vmem:[%s204 + $0x3d8] sm:$0xff] %v1853
        %2110 = vst [vmem:[%s204 + $0x3e0] sm:$0xff] %v1854
        %2111 = vst [vmem:[%s204 + $0x3e8] sm:$0xff] %v1855
        %2112 = vst [vmem:[%s204 + $0x3f0] sm:$0xff] %v1856
        %2113 = vst [vmem:[%s204 + $0x3f8] sm:$0xff] %v1857
        %2114 = vst [vmem:[%s204 + $0x400] sm:$0xff] %v1858
        %2115 = vst [vmem:[%s204 + $0x408] sm:$0xff] %v1859
        %2116 = vst [vmem:[%s204 + $0x410] sm:$0xff] %v1860
        %2117 = vst [vmem:[%s204 + $0x418] sm:$0xff] %v1861
        %2118 = vst [vmem:[%s204 + $0x420] sm:$0xff] %v1862
        %2119 = vst [vmem:[%s204 + $0x428] sm:$0xff] %v1863
        %2120 = vst [vmem:[%s204 + $0x430] sm:$0xff] %v1864
        %2121 = vst [vmem:[%s204 + $0x438] sm:$0xff] %v1865
        %2122 = vst [vmem:[%s204 + $0x440] sm:$0xff] %v1866
        %2123 = vst [vmem:[%s204 + $0x448] sm:$0xff] %v1867
        %2124 = vst [vmem:[%s204 + $0x450] sm:$0xff] %v1868
        %2125 = vst [vmem:[%s204 + $0x458] sm:$0xff] %v1869
        %2126 = vst [vmem:[%s204 + $0x460] sm:$0xff] %v1870
        %2127 = vst [vmem:[%s204 + $0x468] sm:$0xff] %v1871
        %2128 = vst [vmem:[%s204 + $0x470] sm:$0xff] %v1872
        %2129 = vst [vmem:[%s204 + $0x478] sm:$0xff] %v1873
        %2130 = vst [vmem:[%s204 + $0x480] sm:$0xff] %v1874
        %2131 = vst [vmem:[%s204 + $0x488] sm:$0xff] %v1875
        %2132 = vst [vmem:[%s204 + $0x490] sm:$0xff] %v1876
        %2133 = vst [vmem:[%s204 + $0x498] sm:$0xff] %v1877
        %2134 = vst [vmem:[%s204 + $0x4a0] sm:$0xff] %v1878
        %2135 = vst [vmem:[%s204 + $0x4a8] sm:$0xff] %v1879
        %2136 = vst [vmem:[%s204 + $0x4b0] sm:$0xff] %v1880
        %2137 = vst [vmem:[%s204 + $0x4b8] sm:$0xff] %v1881
        %2138 = vst [vmem:[%s204 + $0x4c0] sm:$0xff] %v1882
        %2139 = vst [vmem:[%s204 + $0x4c8] sm:$0xff] %v1883
        %2140 = vst [vmem:[%s204 + $0x4d0] sm:$0xff] %v1884
        %2141 = vst [vmem:[%s204 + $0x4d8] sm:$0xff] %v1885
        %2142 = vst [vmem:[%s204 + $0x4e0] sm:$0xff] %v1886
        %2143 = vst [vmem:[%s204 + $0x4e8] sm:$0xff] %v1887
        %2144 = vst [vmem:[%s204 + $0x4f0] sm:$0xff] %v1888
        %2145 = vst [vmem:[%s204 + $0x4f8] sm:$0xff] %v1889
        %2146 = vst [vmem:[%s204 + $0x500] sm:$0xff] %v1890
        %2147 = vst [vmem:[%s204 + $0x508] sm:$0xff] %v1891
        %2148 = vst [vmem:[%s204 + $0x510] sm:$0xff] %v1892
        %2149 = vst [vmem:[%s204 + $0x518] sm:$0xff] %v1893
        %2150 = vst [vmem:[%s204 + $0x520] sm:$0xff] %v1894
        %2151 = vst [vmem:[%s204 + $0x528] sm:$0xff] %v1895
        %2152 = vst [vmem:[%s204 + $0x530] sm:$0xff] %v1896
        %2153 = vst [vmem:[%s204 + $0x538] sm:$0xff] %v1897
        %2154 = vst [vmem:[%s204 + $0x540] sm:$0xff] %v1898
        %2155 = vst [vmem:[%s204 + $0x548] sm:$0xff] %v1899
        %2156 = vst [vmem:[%s204 + $0x550] sm:$0xff] %v1900
        %2157 = vst [vmem:[%s204 + $0x558] sm:$0xff] %v1901
        %2158 = vst [vmem:[%s204 + $0x560] sm:$0xff] %v1902
        %2159 = vst [vmem:[%s204 + $0x568] sm:$0xff] %v1903
        %2160 = vst [vmem:[%s204 + $0x570] sm:$0xff] %v1904
        %2161 = vst [vmem:[%s204 + $0x578] sm:$0xff] %v1905
        %2162 = vst [vmem:[%s204 + $0x580] sm:$0xff] %v1906
        %2163 = vst [vmem:[%s204 + $0x588] sm:$0xff] %v1907
        %2164 = vst [vmem:[%s204 + $0x590] sm:$0xff] %v1908
        %2165 = vst [vmem:[%s204 + $0x598] sm:$0xff] %v1909
        %2166 = vst [vmem:[%s204 + $0x5a0] sm:$0xff] %v1910
        %2167 = vst [vmem:[%s204 + $0x5a8] sm:$0xff] %v1911
        %2168 = vst [vmem:[%s204 + $0x5b0] sm:$0xff] %v1912
        %2169 = vst [vmem:[%s204 + $0x5b8] sm:$0xff] %v1913
        %2170 = vst [vmem:[%s204 + $0x5c0] sm:$0xff] %v1914
        %2171 = vst [vmem:[%s204 + $0x5c8] sm:$0xff] %v1915
        %2172 = vst [vmem:[%s204 + $0x5d0] sm:$0xff] %v1916
        %2173 = vst [vmem:[%s204 + $0x5d8] sm:$0xff] %v1917
        %2174 = vst [vmem:[%s204 + $0x5e0] sm:$0xff] %v1918
        %2175 = vst [vmem:[%s204 + $0x5e8] sm:$0xff] %v1919
        %2176 = vst [vmem:[%s204 + $0x5f0] sm:$0xff] %v1920
        %2177 = vst [vmem:[%s204 + $0x5f8] sm:$0xff] %v1921
        %2178 = vst [vmem:[%s204 + $0x600] sm:$0xff] %v1922
        %2179 = vst [vmem:[%s204 + $0x608] sm:$0xff] %v1923
        %2180 = vst [vmem:[%s204 + $0x610] sm:$0xff] %v1924
        %2181 = vst [vmem:[%s204 + $0x618] sm:$0xff] %v1925
        %2182 = vst [vmem:[%s204 + $0x620] sm:$0xff] %v1926
        %2183 = vst [vmem:[%s204 + $0x628] sm:$0xff] %v1927
        %2184 = vst [vmem:[%s204 + $0x630] sm:$0xff] %v1928
        %2185 = vst [vmem:[%s204 + $0x638] sm:$0xff] %v1929
        %2186 = vst [vmem:[%s204 + $0x640] sm:$0xff] %v1930
        %2187 = vst [vmem:[%s204 + $0x648] sm:$0xff] %v1931
        %2188 = vst [vmem:[%s204 + $0x650] sm:$0xff] %v1932
        %2189 = vst [vmem:[%s204 + $0x658] sm:$0xff] %v1933
        %2190 = vst [vmem:[%s204 + $0x660] sm:$0xff] %v1934
        %2191 = vst [vmem:[%s204 + $0x668] sm:$0xff] %v1935
        %2192 = vst [vmem:[%s204 + $0x670] sm:$0xff] %v1936
        %2193 = vst [vmem:[%s204 + $0x678] sm:$0xff] %v1937
        %2194 = vst [vmem:[%s204 + $0x680] sm:$0xff] %v1938
        %2195 = vst [vmem:[%s204 + $0x688] sm:$0xff] %v1939
        %2196 = vst [vmem:[%s204 + $0x690] sm:$0xff] %v1940
        %2197 = vst [vmem:[%s204 + $0x698] sm:$0xff] %v1941
        %2198 = vst [vmem:[%s204 + $0x6a0] sm:$0xff] %v1942
        %2199 = vst [vmem:[%s204 + $0x6a8] sm:$0xff] %v1943
        %2200 = vst [vmem:[%s204 + $0x6b0] sm:$0xff] %v1944
        %2201 = vst [vmem:[%s204 + $0x6b8] sm:$0xff] %v1945
        %2202 = vst [vmem:[%s204 + $0x6c0] sm:$0xff] %v1946
        %2203 = vst [vmem:[%s204 + $0x6c8] sm:$0xff] %v1947
        %2204 = vst [vmem:[%s204 + $0x6d0] sm:$0xff] %v1948
        %2205 = vst [vmem:[%s204 + $0x6d8] sm:$0xff] %v1949
        %2206 = vst [vmem:[%s204 + $0x6e0] sm:$0xff] %v1950
        %2207 = vst [vmem:[%s204 + $0x6e8] sm:$0xff] %v1951
        %2208 = vst [vmem:[%s204 + $0x6f0] sm:$0xff] %v1952
        %2209 = vst [vmem:[%s204 + $0x6f8] sm:$0xff] %v1953
        %2210 = vst [vmem:[%s204 + $0x700] sm:$0xff] %v1954
        %2211 = vst [vmem:[%s204 + $0x708] sm:$0xff] %v1955
        %2212 = vst [vmem:[%s204 + $0x710] sm:$0xff] %v1956
        %2213 = vst [vmem:[%s204 + $0x718] sm:$0xff] %v1957
        %2214 = vst [vmem:[%s204 + $0x720] sm:$0xff] %v1958
        %2215 = vst [vmem:[%s204 + $0x728] sm:$0xff] %v1959
        %2216 = vst [vmem:[%s204 + $0x730] sm:$0xff] %v1960
        %2217 = vst [vmem:[%s204 + $0x738] sm:$0xff] %v1961
        %2218 = vst [vmem:[%s204 + $0x740] sm:$0xff] %v1962
        %2219 = vst [vmem:[%s204 + $0x748] sm:$0xff] %v1963
        %2220 = vst [vmem:[%s204 + $0x750] sm:$0xff] %v1964
        %2221 = vst [vmem:[%s204 + $0x758] sm:$0xff] %v1965
        %2222 = vst [vmem:[%s204 + $0x760] sm:$0xff] %v1966
        %2223 = vst [vmem:[%s204 + $0x768] sm:$0xff] %v1967
        %2224 = vst [vmem:[%s204 + $0x770] sm:$0xff] %v1968
        %2225 = vst [vmem:[%s204 + $0x778] sm:$0xff] %v1969
        %2226 = vst [vmem:[%s204 + $0x780] sm:$0xff] %v1970
        %2227 = vst [vmem:[%s204 + $0x788] sm:$0xff] %v1971
        %2228 = vst [vmem:[%s204 + $0x790] sm:$0xff] %v1972
        %2229 = vst [vmem:[%s204 + $0x798] sm:$0xff] %v1973
        %2230 = vst [vmem:[%s204 + $0x7a0] sm:$0xff] %v1974
        %2231 = vst [vmem:[%s204 + $0x7a8] sm:$0xff] %v1975
        %2232 = vst [vmem:[%s204 + $0x7b0] sm:$0xff] %v1976
        %2233 = vst [vmem:[%s204 + $0x7b8] sm:$0xff] %v1977
        %2234 = vst [vmem:[%s204 + $0x7c0] sm:$0xff] %v1978
        %2235 = vst [vmem:[%s204 + $0x7c8] sm:$0xff] %v1979
        %2236 = vst [vmem:[%s204 + $0x7d0] sm:$0xff] %v1980
        %2237 = vst [vmem:[%s204 + $0x7d8] sm:$0xff] %v1981
        %2238 = vst [vmem:[%s204 + $0x7e0] sm:$0xff] %v1982
        %2239 = vst [vmem:[%s204 + $0x7e8] sm:$0xff] %v1983
        %2240 = vst [vmem:[%s204 + $0x7f0] sm:$0xff] %v1984
        %2241 = vst [vmem:[%s204 + $0x7f8] sm:$0xff] %v1985
        %s2242 = sand.u32 %s97, 1
        %s2243 = scalar_lea.sflag [#allocation4], %s2242
        %s2244 = sand.u32 %s97, 1
        %s2245 = smul.addr %s2244, 2048
        %s2246 = scalar_lea.vmem [#allocation7], %s2245
        // Predicated region
        $region41: #{tpu_custom_call.1} parent=31 // pred_check
          %p2247 = pneg %p107
        $region42: #{tpu_custom_call.1} parent=31 // pred_check_branch
          %2249 = sbr.rel (%p2247) target = $region44
        $region43: #{tpu_custom_call.1} parent=31 // pred_region
          %s2250 = smul.u32 2, %s21
          %s2252 = ssub.s32 32768, 32768
          %2253 = vsyncadd %s2243, %s2252
          %s2254 = smul.addr %s2250, 128
          %s2255 = smul.addr %s2254, 128
          %s2256 = scalar_lea.hbm %s3, %s2255
          %s2257 = sshll.u32 %s2246, 4
          %s2258 = int_to_ptr.vmem [resolvable:$true] %s2257
          %2263 = dma.vmem_to_hbm [thread:$0]  %s2258, 32768, %s2256, %s2243, 512, 512, 32
        $region44: #{tpu_custom_call.1} parent=31 // pred_fallthru
          _
      $region32: #{tpu_custom_call.1} parent=5 // pred_fallthru
        _
      %p2264 = scmp.le.s32.totalorder 2, %s16
      // Predicated region
      $region45: #{tpu_custom_call.1} parent=5 // pred_check
        %p2265 = pneg %p2264
      $region46: #{tpu_custom_call.1} parent=5 // pred_check_branch
        %2267 = sbr.rel (%p2265) target = $region48
      $region47: #{tpu_custom_call.1} parent=5 // pred_region
        %s2268 = ssub.s32 %s16, 2
        // Predicated region
        $region49: #{tpu_custom_call.1} parent=47 // pred_check
          %p2269 = pneg %p113
        $region50: #{tpu_custom_call.1} parent=47 // pred_check_branch
          %2271 = sbr.rel (%p2269) target = $region52
        $region51: #{tpu_custom_call.1} parent=47 // pred_region
          %s2272 = sand.u32 %s98, 1
          %s2273 = scalar_lea.sflag [#allocation4], %s2272
          %s2274 = sand.u32 %s98, 1
          %s2275 = smul.addr %s2274, 2048
          %s2276 = scalar_lea.vmem [#allocation7], %s2275
          %2277 = dma.done %s2273, 32768
        $region52: #{tpu_custom_call.1} parent=47 // pred_fallthru
          _
      $region48: #{tpu_custom_call.1} parent=5 // pred_fallthru
        _
    $region6: #{tpu_custom_call.1} parent=1 // loop_footer
      %s20 = sadd.s32 1, %s16
    $region7: #{tpu_custom_call.1} parent=1 // loop_footer_branch
      %15 = sbr.rel target = $region3
    $region8: #{tpu_custom_call.1} parent=1 // loop_exit
      _
    %2278 = vsyncpa [#allocation3], 1
    %s2279 = scalar_lea.sflag [#allocation3], 1
    %2280 = vsyncpa %s2279, 1
    %2281 = vsyncpa [#allocation6], 1
    %2282 = vsyncpa [#allocation4], 1
    %s2283 = scalar_lea.sflag [#allocation4], 1
    %2284 = vsyncpa %s2283, 1

</llo_original>
